<compile_context>
chip_gen: v5e
topology: v5e:2x2
jax: 0.10.0
libtpu: 0.0.40
codegen_flags: <defaults>
</compile_context>

<pallas_src>
import functools

import jax
import jax.numpy as jnp
from jax.experimental import pallas as pl
from jax.experimental.pallas import tpu as pltpu

EPS = 1e-8       # module-level EPS in GeoVec.py
LN_EPS = 1e-5    # torch.nn.LayerNorm default eps

# Raw (torch-equivalent) parameter set; all linear weights stored transposed as (in, out).
PARAM_NAMES = [
    "f1_Wv1", "f1_Wv2", "f1_Ws", "f1_bs", "f1_Wg", "f1_bg",   # ff.ff_1.lin  GVL(S,V,S,V)
    "f1_Wav",                                                 # ff.ff_1.act_vec VNL(V,V,leaky)
    "f2_Wv1", "f2_Wv2", "f2_Ws", "f2_bs", "f2_Wg", "f2_bg",   # ff.ff_2      GVL(S,V,S,V)
    "g_Wv1", "g_Wv2", "g_Ws", "g_bs", "g_Wg", "g_bg",         # gate.gate    GVL(3S,3V,S,V)
    "ln_gamma", "ln_beta",                                    # norm.sca_norm LayerNorm(S)
]


def _param_shapes(S, V):
    return {
        "f1_Wv1": (V, V), "f1_Wv2": (V, V), "f1_Ws": (V + S, S), "f1_bs": (1, S),
        "f1_Wg": (S, V), "f1_bg": (1, V),
        "f1_Wav": (V, V),
        "f2_Wv1": (V, V), "f2_Wv2": (V, V), "f2_Ws": (V + S, S), "f2_bs": (1, S),
        "f2_Wg": (S, V), "f2_bg": (1, V),
        "g_Wv1": (3 * V, 3 * V), "g_Wv2": (3 * V, V), "g_Ws": (3 * V + 3 * S, S),
        "g_bs": (1, S), "g_Wg": (S, V), "g_bg": (1, V),
        "ln_gamma": (1, S), "ln_beta": (1, S),
    }


def init_params(key, S, V):
    shapes = _param_shapes(S, V)
    keys = jax.random.split(key, len(PARAM_NAMES))
    params = {}
    for k, name in zip(keys, PARAM_NAMES):
        if name == "ln_gamma":
            params[name] = jnp.ones(shapes[name], jnp.float32)
        elif name == "ln_beta":
            params[name] = jnp.zeros(shapes[name], jnp.float32)
        else:
            scale = 0.2 if "_W" in name else 0.1
            params[name] = jax.random.normal(k, shapes[name], jnp.float32) * scale
    return params


# ------------------------------ helpers -----------------------------------------------------

def _round_up(x, m):
    return (x + m - 1) // m * m


def _cdiv(a, b):
    return -(-a // b)


def _make_layout(S, V):
    """Static row layout of the 3 packed weight slabs (all block offsets 8-row aligned)."""
    def build(blocks):
        entries, off = {}, 0
        for name, rows in blocks:
            entries[name] = (off, rows)
            off += _round_up(rows, 8)
        return entries, off

    s_entries, s_rows = build([
        ("f1_Ws", V + S), ("f1_bs", 1),
        ("f2_Ws", V + S), ("f2_bs", 1),
        ("g_Ws", 3 * V + 2 * S), ("g_bs", 1),
        ("ln_gamma", 1), ("ln_beta", 1),
    ])
    v_entries, v_rows = build([
        ("f1_Wv1", V), ("f1_Wv2", V), ("f1_Wav", V), ("f1_Wg", S), ("f1_bg", 1),
        ("f2_Wv1", V), ("f2_Wv2", V), ("f2_Wg", S), ("f2_bg", 1),
        ("g_Wv2", 3 * V), ("g_Wg", S), ("g_bg", 1),
    ])
    v3_entries, v3_rows = build([("g_Wv1", 2 * V)])

    return {"S": (s_entries, s_rows, S),
            "V": (v_entries, v_rows, V),
            "3V": (v3_entries, v3_rows, 3 * V)}


def pack_params(params, S, V):
    """Fold the gate's 3-way concat and pack all weights into 3 column-grouped bf16 slabs."""
    layout = _make_layout(S, V)
    g_Ws, g_Wv1 = params["g_Ws"], params["g_Wv1"]

    # Gate concat fold:  [x, res, x-res] @ [A; B; C]  ==  x @ (A + C) + res @ (B - C)
    derived = {
        # --- S-column slab ---
        "f1_Ws": params["f1_Ws"], "f1_bs": params["f1_bs"],
        "f2_Ws": params["f2_Ws"], "f2_bs": params["f2_bs"],
        "g_Ws": jnp.concatenate(
            [g_Ws[:3 * V],
             g_Ws[3 * V:3 * V + S] + g_Ws[3 * V + 2 * S:],          # x rows (A + C)
             g_Ws[3 * V + S:3 * V + 2 * S] - g_Ws[3 * V + 2 * S:]], # res rows (B - C)
            axis=0),
        "g_bs": params["g_bs"],
        "ln_gamma": params["ln_gamma"], "ln_beta": params["ln_beta"],
        # --- V-column slab ---
        "f1_Wv1": params["f1_Wv1"], "f1_Wv2": params["f1_Wv2"], "f1_Wav": params["f1_Wav"],
        "f1_Wg": params["f1_Wg"], "f1_bg": params["f1_bg"],
        "f2_Wv1": params["f2_Wv1"], "f2_Wv2": params["f2_Wv2"],
        "f2_Wg": params["f2_Wg"], "f2_bg": params["f2_bg"],
        "g_Wv2": params["g_Wv2"], "g_Wg": params["g_Wg"], "g_bg": params["g_bg"],
        # --- 3V-column slab ---
        "g_Wv1": jnp.concatenate(
            [g_Wv1[:V] + g_Wv1[2 * V:],                             # x rows (A + C)
             g_Wv1[V:2 * V] - g_Wv1[2 * V:]],                       # res rows (B - C)
            axis=0),
    }

    slabs = []
    for key in ("S", "V", "3V"):
        entries, rows, cols = layout[key]
        slab = jnp.zeros((rows, cols), jnp.bfloat16)
        for name, (off, r) in entries.items():
            slab = slab.at[off:off + r, :].set(
                derived[name].astype(jnp.bfloat16).reshape(r, cols))
        slabs.append(slab)
    return tuple(slabs)


# ------------------------------------------- Pallas kernel -----------------------------------

def _kernel(layout, S, V, x_ref, ps_ref, pv_ref, p3_ref, out_ref):
    slabs = {"S": ps_ref, "V": pv_ref, "3V": p3_ref}

    def w(slab, name):
        off, rows = layout[slab][0][name]
        return slabs[slab][off:off + rows, :]                 # bf16 static slice of the slab

    def dot(a, b):
        # bf16 MXU path, f32 accumulation.
        return jnp.dot(a.astype(jnp.bfloat16), b, preferred_element_type=jnp.float32)

    def vdot(v3, wmat):
        # apply (Cin, Cout) weight to the 3 components in ONE MXU issue via a row concat
        m = v3[0].shape[0]
        o = dot(jnp.concatenate(v3, axis=0), wmat)            # (3m, Cout)
        return (o[:m], o[m:2 * m], o[2 * m:])

    def csum(a, b):
        # sum over the 3-component axis of a*b  -> (m, C)
        return a[0] * b[0] + a[1] * b[1] + a[2] * b[2]

    x = x_ref[...]                                            # (tm, Wp) f32, lane-dense slab
    sca = x[:, :S]
    vec = (x[:, S:S + V], x[:, S + V:S + 2 * V], x[:, S + 2 * V:S + 3 * V])
    res_s, res_v = sca, vec

    # ---- ff.ff_1 : GVP = GVL(S,V,S,V) + VNL(leaky) on vec + LeakyReLU on sca ----
    v1 = vdot(vec, w("V", "f1_Wv1"))                                          # 3 x (tm, V)
    v1n = jnp.sqrt(csum(v1, v1))                                              # (tm, V)
    s = dot(jnp.concatenate([v1n, sca], axis=-1), w("S", "f1_Ws")) + w("S", "f1_bs")
    v2 = vdot(v1, w("V", "f1_Wv2"))
    g = jax.nn.sigmoid(dot(s, w("V", "f1_Wg")) + w("V", "f1_bg"))             # (tm, V)
    vh = tuple(g * vk for vk in v2)

    # VNL leaky activation: v - (vec_dot<0) * 0.99 * scale * vo  (== torch's expanded form)
    vo = vdot(vh, w("V", "f1_Wav"))
    vdotp = csum(vh, vo)
    nsq = csum(vo, vo)
    scale = vdotp / (nsq + EPS)                               # exact division (review note)
    adj = jnp.where(vdotp >= 0, 0.0, 0.99 * scale)
    vh = tuple(vk - adj * ok for vk, ok in zip(vh, vo))
    s = jnp.where(s >= 0, s, 0.01 * s)                        # LeakyReLU(0.01)

    # ---- ff.dropout : GVDropout(p=0) == identity ----
    # TODO(synk): non-zero dropout (torch.nn.Dropout RNG) not reproduced; p=0 returns input.

    # ---- ff.ff_2 : GVL(S,V,S,V) ----
    v1 = vdot(vh, w("V", "f2_Wv1"))
    v1n = jnp.sqrt(csum(v1, v1))
    x_s = dot(jnp.concatenate([v1n, s], axis=-1), w("S", "f2_Ws")) + w("S", "f2_bs")
    v2 = vdot(v1, w("V", "f2_Wv2"))
    g = jax.nn.sigmoid(dot(x_s, w("V", "f2_Wg")) + w("V", "f2_bg"))
    x_v = tuple(g * vk for vk in v2)                                          # 3 x (tm, V)

    # ---- gate : GVGateResidue(full_gate=True), [x,res,x-res] concat folded into 2-way weights
    vin = tuple(jnp.concatenate([xk, rk], axis=-1) for xk, rk in zip(x_v, res_v))   # (tm, 2V)
    v1g = vdot(vin, w("3V", "g_Wv1"))                                         # 3 x (tm, 3V)
    v1gn = jnp.sqrt(csum(v1g, v1g))                                           # (tm, 3V)
    gs = dot(jnp.concatenate([v1gn, x_s, res_s], axis=-1), w("S", "g_Ws")) + w("S", "g_bs")
    v2g = vdot(v1g, w("V", "g_Wv2"))                                          # 3 x (tm, V)
    gg = jax.nn.sigmoid(dot(gs, w("V", "g_Wg")) + w("V", "g_bg"))
    g_vec = tuple(gg * vk for vk in v2g)
    g_sca = jax.nn.sigmoid(gs)
    g_vn = jax.nn.sigmoid(jnp.sqrt(csum(g_vec, g_vec)))                       # (tm, V)
    out_s = x_s * g_sca + res_s * (1.0 - g_sca)
    out_v = tuple(xk * g_vn + rk * (1.0 - g_vn) for xk, rk in zip(x_v, res_v))

    # ---- norm : LayerNorm(S) on sca, VecLayerNorm (gamma=1, beta=0 folded) on vec ----
    mu = jnp.mean(out_s, axis=-1, keepdims=True)
    d = out_s - mu
    var = jnp.mean(d * d, axis=-1, keepdims=True)
    out_s = d * jax.lax.rsqrt(var + LN_EPS) * w("S", "ln_gamma") + w("S", "ln_beta")

    ssq = jnp.sum(csum(out_v, out_v), axis=-1, keepdims=True)                 # (tm, 1)
    inv = jax.lax.rsqrt((ssq + EPS) / V)
    # (vec != 0) mask omitted: inv is always finite, so exact zeros stay exact zeros.
    out_v = tuple(vk * inv for vk in out_v)

    # single lane-dense (>=128-wide, unmasked) store: [ sca | vec_x | vec_y | vec_z | pad ]
    pieces = [out_s, out_v[0], out_v[1], out_v[2]]
    pad_w = out_ref.shape[-1] - (S + 3 * V)
    if pad_w:
        pieces.append(jnp.zeros((out_s.shape[0], pad_w), jnp.float32))
    out_ref[...] = jnp.concatenate(pieces, axis=-1).astype(out_ref.dtype)


# ------------------------------------------- wrappers ----------------------------------------

def _vmem_rows_budget(S, V, Wp, slab_bytes, budget=40 * 1024 * 1024):
    """Crude per-row working-set estimate used to cap the row tile (v7x has only 64 MiB VMEM)."""
    io_per_row = 2 * 2 * Wp * 4                          # double-buffered f32 in + out blocks
    inter_per_row = 4 * (8 * S + 40 * V + 8 * 3 * V)     # generous bound on live f32 temporaries
    per_row = io_per_row + inter_per_row
    max_rows = max(8, ((budget - slab_bytes) // per_row) // 8 * 8)
    return max_rows, per_row


def gv_gate_norm_feedforward_fused(x, packed, S, V, tm=512):
    """Production entry point: x is the lane-dense fused slab (M, Wp) with
    Wp >= S + 3V (padding columns ignored); returns the same layout. No extra HBM passes."""
    M, Wp = x.shape
    assert Wp >= S + 3 * V
    layout = _make_layout(S, V)
    ps, pv, p3 = packed

    slab_bytes = sum(int(p.size) * p.dtype.itemsize for p in (ps, pv, p3))
    max_rows, per_row = _vmem_rows_budget(S, V, Wp, slab_bytes)
    tm_cap = max(8, min(tm, max_rows))

    # Tile selection: >=2 grid steps so both v7x TensorCores get work via ("parallel",);
    # rows padded only to the next multiple of 8 (no up-to-tm remainder waste).
    M8 = _round_up(M, 8)
    steps = 1 if M8 < 16 else max(2, _cdiv(M8, tm_cap))
    tm_eff = _round_up(_cdiv(M8, steps), 8)
    M_pad = steps * tm_eff
    if M_pad != M:
        x = jnp.pad(x, ((0, M_pad - M), (0, 0)))

    vmem_limit = int(min(100 * 2 ** 20,
                         max(32 * 2 ** 20, 2 * (slab_bytes + tm_eff * per_row))))

    out = pl.pallas_call(
        functools.partial(_kernel, layout, S, V),
        grid=(steps,),
        in_specs=[
            pl.BlockSpec((tm_eff, Wp), lambda i: (i, 0)),
            # grid-invariant weight slabs: whole array resident in VMEM once,
            # no per-step double-buffering
            pl.BlockSpec(memory_space=pltpu.MemorySpace.VMEM),
            pl.BlockSpec(memory_space=pltpu.MemorySpace.VMEM),
            pl.BlockSpec(memory_space=pltpu.MemorySpace.VMEM),
        ],
        out_specs=pl.BlockSpec((tm_eff, Wp), lambda i: (i, 0)),
        out_shape=jax.ShapeDtypeStruct((M_pad, Wp), x.dtype),
        compiler_params=pltpu.CompilerParams(
            dimension_semantics=("parallel",),
            vmem_limit_bytes=vmem_limit,
        ),
    )(x, ps, pv, p3)

    return out if M_pad == M else out[:M]


def gv_gate_norm_feedforward(sca, vec, params, tm=512):
    """Compatibility wrapper. sca: (M, S) f32, vec: (3, M, V) f32 (vec[k, m, c] == torch
    vec[b, n, c, k]).  Returns (sca_out (M, S), vec_out (3, M, V)).
    Note: the pack/unpack here is two extra HBM passes; latency-critical callers should use
    gv_gate_norm_feedforward_fused() and keep the lane-dense (M, S+3V) layout end-to-end."""
    M, S = sca.shape
    three, M2, V = vec.shape
    assert three == 3 and M2 == M

    Wp = _round_up(S + 3 * V, 128)
    packed = pack_params(params, S, V)

    vec_flat = jnp.transpose(vec, (1, 0, 2)).reshape(M, 3 * V)
    pieces = [sca, vec_flat]
    if Wp > S + 3 * V:
        pieces.append(jnp.zeros((M, Wp - (S + 3 * V)), sca.dtype))
    x = jnp.concatenate(pieces, axis=-1)

    out = gv_gate_norm_feedforward_fused(x, packed, S, V, tm=tm)
    sca_out = out[:, :S]
    vec_out = out[:, S:S + 3 * V].reshape(M, 3, V).transpose(1, 0, 2)
    return sca_out, vec_out


# ------------------------------------------- pure-JAX reference ------------------------------
# Direct f32 translation of the torch module (unfolded weights, explicit concatenations) used
# to validate the folded / fused bf16-MXU kernel.

def _ref_gvl(sca, v, Wv1, Wv2, Ws, bs, Wg, bg):
    v1 = tuple(jnp.dot(vk, Wv1, preferred_element_type=jnp.float32) for vk in v)
    v1_norm = jnp.sqrt(v1[0] * v1[0] + v1[1] * v1[1] + v1[2] * v1[2])
    cat = jnp.concatenate([v1_norm, sca], axis=-1)
    sca_out = jnp.dot(cat, Ws, preferred_element_type=jnp.float32) + bs
    v2 = tuple(jnp.dot(vk, Wv2, preferred_element_type=jnp.float32) for vk in v1)
    g = jax.nn.sigmoid(jnp.dot(sca_out, Wg, preferred_element_type=jnp.float32) + bg)
    return sca_out, tuple(g * vk for vk in v2)


def _ref_vnl_leaky(v, W):
    vo = tuple(jnp.dot(vk, W, preferred_element_type=jnp.float32) for vk in v)
    vec_dot = v[0] * vo[0] + v[1] * vo[1] + v[2] * vo[2]
    mask = (vec_dot >= 0).astype(v[0].dtype)
    nsq = vo[0] * vo[0] + vo[1] * vo[1] + vo[2] * vo[2]
    scale = vec_dot / (nsq + EPS)
    return tuple(0.01 * vk + 0.99 * (mask * vk + (1.0 - mask) * (vk - ok * scale))
                 for vk, ok in zip(v, vo))


def reference(sca, vec, p):
    v = (vec[0], vec[1], vec[2])
    res_s, res_v = sca, v

    s, v1 = _ref_gvl(sca, v, p["f1_Wv1"], p["f1_Wv2"], p["f1_Ws"], p["f1_bs"], p["f1_Wg"], p["f1_bg"])
    v1 = _ref_vnl_leaky(v1, p["f1_Wav"])
    s = jnp.where(s >= 0, s, 0.01 * s)

    s, v2 = _ref_gvl(s, v1, p["f2_Wv1"], p["f2_Wv2"], p["f2_Ws"], p["f2_bs"], p["f2_Wg"], p["f2_bg"])

    cat_s = jnp.concatenate([s, res_s, s - res_s], axis=-1)
    cat_v = tuple(jnp.concatenate([vk, rk, vk - rk], axis=-1) for vk, rk in zip(v2, res_v))
    g_s, g_v = _ref_gvl(cat_s, cat_v, p["g_Wv1"], p["g_Wv2"], p["g_Ws"], p["g_bs"], p["g_Wg"], p["g_bg"])
    g_s = jax.nn.sigmoid(g_s)
    g_vn = jax.nn.sigmoid(jnp.sqrt(g_v[0] * g_v[0] + g_v[1] * g_v[1] + g_v[2] * g_v[2]))
    out_s = s * g_s + res_s * (1.0 - g_s)
    out_v = tuple(vk * g_vn + rk * (1.0 - g_vn) for vk, rk in zip(v2, res_v))

    mu = jnp.mean(out_s, axis=-1, keepdims=True)
    var = jnp.mean((out_s - mu) ** 2, axis=-1, keepdims=True)
    out_s = (out_s - mu) / jnp.sqrt(var + LN_EPS) * p["ln_gamma"] + p["ln_beta"]

    V = out_v[0].shape[-1]
    ssq = sum(jnp.sum(vk * vk, axis=-1, keepdims=True) for vk in out_v)
    denom = jnp.sqrt((ssq + EPS) / V)
    out_v = tuple((vk / denom) * (vk != 0).astype(vk.dtype) for vk in out_v)
    return out_s, jnp.stack(out_v, axis=0)


if __name__ == "__main__":
    B, N = 2, 8              # batch, nodes  -> M = 16 rows
    S, V = 32, 16            # sca_hidden, vec_hidden
    M = B * N

    key = jax.random.PRNGKey(0)
    k_sca, k_vec, k_par = jax.random.split(key, 3)
    sca = jax.random.normal(k_sca, (M, S), jnp.float32)
    vec = jax.random.normal(k_vec, (3, M, V), jnp.float32)
    params = init_params(k_par, S, V)

    out_s, out_v = gv_gate_norm_feedforward(sca, vec, params)
    jax.block_until_ready((out_s, out_v))

    ref_s, ref_v = reference(sca, vec, params)
    assert out_s.shape == (M, S) and out_v.shape == (3, M, V)
    # Tolerance covers bf16-MXU rounding of the kernel vs the pure-f32 reference.
    assert jnp.allclose(out_s, ref_s, atol=5e-2, rtol=5e-2), float(jnp.max(jnp.abs(out_s - ref_s)))
    assert jnp.allclose(out_v, ref_v, atol=5e-2, rtol=5e-2), float(jnp.max(jnp.abs(out_v - ref_v)))

    print("KERNEL_OK")
</pallas_src>

<mosaic_0001>
module attributes {stable_mosaic.version = 11 : i64} {
  func.func @_kernel(%arg0: i32, %arg1: memref<8x128xf32, #tpu.memory_space<vmem>>, %arg2: memref<248x32xbf16, #tpu.memory_space<vmem>>, %arg3: memref<248x16xbf16, #tpu.memory_space<vmem>>, %arg4: memref<32x48xbf16, #tpu.memory_space<vmem>>, %arg5: memref<8x128xf32, #tpu.memory_space<vmem>>) attributes {dimension_semantics = [#tpu.dimension_semantics<parallel>], iteration_bounds = array<i64: 2>, scalar_prefetch = 0 : i64, scratch_operands = 0 : i64, tpu.core_type = #tpu.core_type<tc>, window_params = [{transform_indices = @transform_0, window_bounds = array<i64: 8, 128>}, {pipeline_mode = #tpu.pipeline_mode<synchronous>, transform_indices = @transform_1, window_bounds = array<i64: 248, 32>}, {pipeline_mode = #tpu.pipeline_mode<synchronous>, transform_indices = @transform_2, window_bounds = array<i64: 248, 16>}, {pipeline_mode = #tpu.pipeline_mode<synchronous>, transform_indices = @transform_3, window_bounds = array<i64: 32, 48>}, {transform_indices = @transform_4, window_bounds = array<i64: 8, 128>}]} {
    %c0 = arith.constant 0 : index
    %c0_0 = arith.constant 0 : index
    %0 = vector.load %arg1[%c0, %c0_0] : memref<8x128xf32, #tpu.memory_space<vmem>>, vector<8x128xf32>
    %1 = vector.extract_strided_slice %0 {offsets = [0, 0], sizes = [8, 32], strides = [1, 1]} : vector<8x128xf32> to vector<8x32xf32>
    %2 = vector.extract_strided_slice %0 {offsets = [0, 32], sizes = [8, 16], strides = [1, 1]} : vector<8x128xf32> to vector<8x16xf32>
    %3 = vector.extract_strided_slice %0 {offsets = [0, 48], sizes = [8, 16], strides = [1, 1]} : vector<8x128xf32> to vector<8x16xf32>
    %4 = vector.extract_strided_slice %0 {offsets = [0, 64], sizes = [8, 16], strides = [1, 1]} : vector<8x128xf32> to vector<8x16xf32>
    %c0_1 = arith.constant 0 : index
    %c0_2 = arith.constant 0 : index
    %5 = vector.load %arg3[%c0_1, %c0_2] : memref<248x16xbf16, #tpu.memory_space<vmem>>, vector<16x16xbf16>
    %6 = tpu.concatenate %2, %3, %4 in 0 : vector<8x16xf32>, vector<8x16xf32>, vector<8x16xf32> -> vector<24x16xf32>
    %7 = arith.truncf %6 : vector<24x16xf32> to vector<24x16xbf16>
    %cst = arith.constant dense<0.000000e+00> : vector<24x16xf32>
    %8 = tpu.matmul %7, %5, %cst {dimension_numbers = #tpu.dot_dimension_numbers<[1], [0], [0], [1], [0, 0, 1, 1], [], []>} : vector<24x16xbf16>, vector<16x16xbf16>, vector<24x16xf32> -> vector<24x16xf32>
    %9 = vector.extract_strided_slice %8 {offsets = [0, 0], sizes = [8, 16], strides = [1, 1]} : vector<24x16xf32> to vector<8x16xf32>
    %10 = vector.extract_strided_slice %8 {offsets = [8, 0], sizes = [8, 16], strides = [1, 1]} : vector<24x16xf32> to vector<8x16xf32>
    %11 = vector.extract_strided_slice %8 {offsets = [16, 0], sizes = [8, 16], strides = [1, 1]} : vector<24x16xf32> to vector<8x16xf32>
    %12 = arith.mulf %9, %9 : vector<8x16xf32>
    %13 = arith.mulf %10, %10 : vector<8x16xf32>
    %14 = arith.addf %12, %13 : vector<8x16xf32>
    %15 = arith.mulf %11, %11 : vector<8x16xf32>
    %16 = arith.addf %14, %15 : vector<8x16xf32>
    %17 = math.sqrt %16 : vector<8x16xf32>
    %18 = tpu.concatenate %17, %1 in 1 : vector<8x16xf32>, vector<8x32xf32> -> vector<8x48xf32>
    %c0_3 = arith.constant 0 : index
    %c0_4 = arith.constant 0 : index
    %19 = vector.load %arg2[%c0_3, %c0_4] : memref<248x32xbf16, #tpu.memory_space<vmem>>, vector<48x32xbf16>
    %20 = arith.truncf %18 : vector<8x48xf32> to vector<8x48xbf16>
    %cst_5 = arith.constant dense<0.000000e+00> : vector<8x32xf32>
    %21 = tpu.matmul %20, %19, %cst_5 {dimension_numbers = #tpu.dot_dimension_numbers<[1], [0], [0], [1], [0, 0, 1, 1], [], []>} : vector<8x48xbf16>, vector<48x32xbf16>, vector<8x32xf32> -> vector<8x32xf32>
    %c48 = arith.constant 48 : index
    %c0_6 = arith.constant 0 : index
    %22 = vector.load %arg2[%c48, %c0_6] : memref<248x32xbf16, #tpu.memory_space<vmem>>, vector<1x32xbf16>
    %23 = arith.extf %22 : vector<1x32xbf16> to vector<1x32xf32>
    %24 = vector.broadcast %23 : vector<1x32xf32> to vector<8x32xf32>
    %25 = arith.addf %21, %24 : vector<8x32xf32>
    %c16 = arith.constant 16 : index
    %c0_7 = arith.constant 0 : index
    %26 = vector.load %arg3[%c16, %c0_7] : memref<248x16xbf16, #tpu.memory_space<vmem>>, vector<16x16xbf16>
    %27 = tpu.concatenate %9, %10, %11 in 0 : vector<8x16xf32>, vector<8x16xf32>, vector<8x16xf32> -> vector<24x16xf32>
    %28 = arith.truncf %27 : vector<24x16xf32> to vector<24x16xbf16>
    %cst_8 = arith.constant dense<0.000000e+00> : vector<24x16xf32>
    %29 = tpu.matmul %28, %26, %cst_8 {dimension_numbers = #tpu.dot_dimension_numbers<[1], [0], [0], [1], [0, 0, 1, 1], [], []>} : vector<24x16xbf16>, vector<16x16xbf16>, vector<24x16xf32> -> vector<24x16xf32>
    %30 = vector.extract_strided_slice %29 {offsets = [0, 0], sizes = [8, 16], strides = [1, 1]} : vector<24x16xf32> to vector<8x16xf32>
    %31 = vector.extract_strided_slice %29 {offsets = [8, 0], sizes = [8, 16], strides = [1, 1]} : vector<24x16xf32> to vector<8x16xf32>
    %32 = vector.extract_strided_slice %29 {offsets = [16, 0], sizes = [8, 16], strides = [1, 1]} : vector<24x16xf32> to vector<8x16xf32>
    %c48_9 = arith.constant 48 : index
    %c0_10 = arith.constant 0 : index
    %33 = vector.load %arg3[%c48_9, %c0_10] : memref<248x16xbf16, #tpu.memory_space<vmem>>, vector<32x16xbf16>
    %34 = arith.truncf %25 : vector<8x32xf32> to vector<8x32xbf16>
    %cst_11 = arith.constant dense<0.000000e+00> : vector<8x16xf32>
    %35 = tpu.matmul %34, %33, %cst_11 {dimension_numbers = #tpu.dot_dimension_numbers<[1], [0], [0], [1], [0, 0, 1, 1], [], []>} : vector<8x32xbf16>, vector<32x16xbf16>, vector<8x16xf32> -> vector<8x16xf32>
    %c80 = arith.constant 80 : index
    %c0_12 = arith.constant 0 : index
    %36 = vector.load %arg3[%c80, %c0_12] : memref<248x16xbf16, #tpu.memory_space<vmem>>, vector<1x16xbf16>
    %37 = arith.extf %36 : vector<1x16xbf16> to vector<1x16xf32>
    %38 = vector.broadcast %37 : vector<1x16xf32> to vector<8x16xf32>
    %39 = arith.addf %35, %38 : vector<8x16xf32>
    %40 = arith.negf %39 : vector<8x16xf32>
    %41 = math.exp %40 : vector<8x16xf32>
    %cst_13 = arith.constant 1.000000e+00 : f32
    %42 = vector.broadcast %cst_13 : f32 to vector<8x16xf32>
    %43 = arith.addf %42, %41 : vector<8x16xf32>
    %44 = arith.divf %42, %43 : vector<8x16xf32>
    %45 = arith.mulf %44, %30 : vector<8x16xf32>
    %46 = arith.mulf %44, %31 : vector<8x16xf32>
    %47 = arith.mulf %44, %32 : vector<8x16xf32>
    %c32 = arith.constant 32 : index
    %c0_14 = arith.constant 0 : index
    %48 = vector.load %arg3[%c32, %c0_14] : memref<248x16xbf16, #tpu.memory_space<vmem>>, vector<16x16xbf16>
    %49 = tpu.concatenate %45, %46, %47 in 0 : vector<8x16xf32>, vector<8x16xf32>, vector<8x16xf32> -> vector<24x16xf32>
    %50 = arith.truncf %49 : vector<24x16xf32> to vector<24x16xbf16>
    %cst_15 = arith.constant dense<0.000000e+00> : vector<24x16xf32>
    %51 = tpu.matmul %50, %48, %cst_15 {dimension_numbers = #tpu.dot_dimension_numbers<[1], [0], [0], [1], [0, 0, 1, 1], [], []>} : vector<24x16xbf16>, vector<16x16xbf16>, vector<24x16xf32> -> vector<24x16xf32>
    %52 = vector.extract_strided_slice %51 {offsets = [0, 0], sizes = [8, 16], strides = [1, 1]} : vector<24x16xf32> to vector<8x16xf32>
    %53 = vector.extract_strided_slice %51 {offsets = [8, 0], sizes = [8, 16], strides = [1, 1]} : vector<24x16xf32> to vector<8x16xf32>
    %54 = vector.extract_strided_slice %51 {offsets = [16, 0], sizes = [8, 16], strides = [1, 1]} : vector<24x16xf32> to vector<8x16xf32>
    %55 = arith.mulf %45, %52 : vector<8x16xf32>
    %56 = arith.mulf %46, %53 : vector<8x16xf32>
    %57 = arith.addf %55, %56 : vector<8x16xf32>
    %58 = arith.mulf %47, %54 : vector<8x16xf32>
    %59 = arith.addf %57, %58 : vector<8x16xf32>
    %60 = arith.mulf %52, %52 : vector<8x16xf32>
    %61 = arith.mulf %53, %53 : vector<8x16xf32>
    %62 = arith.addf %60, %61 : vector<8x16xf32>
    %63 = arith.mulf %54, %54 : vector<8x16xf32>
    %64 = arith.addf %62, %63 : vector<8x16xf32>
    %cst_16 = arith.constant 9.99999993E-9 : f32
    %65 = vector.broadcast %cst_16 : f32 to vector<8x16xf32>
    %66 = arith.addf %64, %65 : vector<8x16xf32>
    %67 = arith.divf %59, %66 : vector<8x16xf32>
    %cst_17 = arith.constant 0.000000e+00 : f32
    %68 = vector.broadcast %cst_17 : f32 to vector<8x16xf32>
    %69 = arith.cmpf oge, %59, %68 : vector<8x16xf32>
    %cst_18 = arith.constant 9.900000e-01 : f32
    %70 = vector.broadcast %cst_18 : f32 to vector<8x16xf32>
    %71 = arith.mulf %70, %67 : vector<8x16xf32>
    %cst_19 = arith.constant 0.000000e+00 : f32
    %72 = vector.broadcast %cst_19 : f32 to vector<8x16xf32>
    %73 = arith.select %69, %72, %71 : vector<8x16xi1>, vector<8x16xf32>
    %74 = arith.mulf %73, %52 : vector<8x16xf32>
    %75 = arith.subf %45, %74 : vector<8x16xf32>
    %76 = arith.mulf %73, %53 : vector<8x16xf32>
    %77 = arith.subf %46, %76 : vector<8x16xf32>
    %78 = arith.mulf %73, %54 : vector<8x16xf32>
    %79 = arith.subf %47, %78 : vector<8x16xf32>
    %cst_20 = arith.constant 0.000000e+00 : f32
    %80 = vector.broadcast %cst_20 : f32 to vector<8x32xf32>
    %81 = arith.cmpf oge, %25, %80 : vector<8x32xf32>
    %cst_21 = arith.constant 0.00999999977 : f32
    %82 = vector.broadcast %cst_21 : f32 to vector<8x32xf32>
    %83 = arith.mulf %82, %25 : vector<8x32xf32>
    %84 = arith.select %81, %25, %83 : vector<8x32xi1>, vector<8x32xf32>
    %c88 = arith.constant 88 : index
    %c0_22 = arith.constant 0 : index
    %85 = vector.load %arg3[%c88, %c0_22] : memref<248x16xbf16, #tpu.memory_space<vmem>>, vector<16x16xbf16>
    %86 = tpu.concatenate %75, %77, %79 in 0 : vector<8x16xf32>, vector<8x16xf32>, vector<8x16xf32> -> vector<24x16xf32>
    %87 = arith.truncf %86 : vector<24x16xf32> to vector<24x16xbf16>
    %cst_23 = arith.constant dense<0.000000e+00> : vector<24x16xf32>
    %88 = tpu.matmul %87, %85, %cst_23 {dimension_numbers = #tpu.dot_dimension_numbers<[1], [0], [0], [1], [0, 0, 1, 1], [], []>} : vector<24x16xbf16>, vector<16x16xbf16>, vector<24x16xf32> -> vector<24x16xf32>
    %89 = vector.extract_strided_slice %88 {offsets = [0, 0], sizes = [8, 16], strides = [1, 1]} : vector<24x16xf32> to vector<8x16xf32>
    %90 = vector.extract_strided_slice %88 {offsets = [8, 0], sizes = [8, 16], strides = [1, 1]} : vector<24x16xf32> to vector<8x16xf32>
    %91 = vector.extract_strided_slice %88 {offsets = [16, 0], sizes = [8, 16], strides = [1, 1]} : vector<24x16xf32> to vector<8x16xf32>
    %92 = arith.mulf %89, %89 : vector<8x16xf32>
    %93 = arith.mulf %90, %90 : vector<8x16xf32>
    %94 = arith.addf %92, %93 : vector<8x16xf32>
    %95 = arith.mulf %91, %91 : vector<8x16xf32>
    %96 = arith.addf %94, %95 : vector<8x16xf32>
    %97 = math.sqrt %96 : vector<8x16xf32>
    %98 = tpu.concatenate %97, %84 in 1 : vector<8x16xf32>, vector<8x32xf32> -> vector<8x48xf32>
    %c56 = arith.constant 56 : index
    %c0_24 = arith.constant 0 : index
    %99 = vector.load %arg2[%c56, %c0_24] : memref<248x32xbf16, #tpu.memory_space<vmem>>, vector<48x32xbf16>
    %100 = arith.truncf %98 : vector<8x48xf32> to vector<8x48xbf16>
    %cst_25 = arith.constant dense<0.000000e+00> : vector<8x32xf32>
    %101 = tpu.matmul %100, %99, %cst_25 {dimension_numbers = #tpu.dot_dimension_numbers<[1], [0], [0], [1], [0, 0, 1, 1], [], []>} : vector<8x48xbf16>, vector<48x32xbf16>, vector<8x32xf32> -> vector<8x32xf32>
    %c104 = arith.constant 104 : index
    %c0_26 = arith.constant 0 : index
    %102 = vector.load %arg2[%c104, %c0_26] : memref<248x32xbf16, #tpu.memory_space<vmem>>, vector<1x32xbf16>
    %103 = arith.extf %102 : vector<1x32xbf16> to vector<1x32xf32>
    %104 = vector.broadcast %103 : vector<1x32xf32> to vector<8x32xf32>
    %105 = arith.addf %101, %104 : vector<8x32xf32>
    %c104_27 = arith.constant 104 : index
    %c0_28 = arith.constant 0 : index
    %106 = vector.load %arg3[%c104_27, %c0_28] : memref<248x16xbf16, #tpu.memory_space<vmem>>, vector<16x16xbf16>
    %107 = tpu.concatenate %89, %90, %91 in 0 : vector<8x16xf32>, vector<8x16xf32>, vector<8x16xf32> -> vector<24x16xf32>
    %108 = arith.truncf %107 : vector<24x16xf32> to vector<24x16xbf16>
    %cst_29 = arith.constant dense<0.000000e+00> : vector<24x16xf32>
    %109 = tpu.matmul %108, %106, %cst_29 {dimension_numbers = #tpu.dot_dimension_numbers<[1], [0], [0], [1], [0, 0, 1, 1], [], []>} : vector<24x16xbf16>, vector<16x16xbf16>, vector<24x16xf32> -> vector<24x16xf32>
    %110 = vector.extract_strided_slice %109 {offsets = [0, 0], sizes = [8, 16], strides = [1, 1]} : vector<24x16xf32> to vector<8x16xf32>
    %111 = vector.extract_strided_slice %109 {offsets = [8, 0], sizes = [8, 16], strides = [1, 1]} : vector<24x16xf32> to vector<8x16xf32>
    %112 = vector.extract_strided_slice %109 {offsets = [16, 0], sizes = [8, 16], strides = [1, 1]} : vector<24x16xf32> to vector<8x16xf32>
    %c120 = arith.constant 120 : index
    %c0_30 = arith.constant 0 : index
    %113 = vector.load %arg3[%c120, %c0_30] : memref<248x16xbf16, #tpu.memory_space<vmem>>, vector<32x16xbf16>
    %114 = arith.truncf %105 : vector<8x32xf32> to vector<8x32xbf16>
    %cst_31 = arith.constant dense<0.000000e+00> : vector<8x16xf32>
    %115 = tpu.matmul %114, %113, %cst_31 {dimension_numbers = #tpu.dot_dimension_numbers<[1], [0], [0], [1], [0, 0, 1, 1], [], []>} : vector<8x32xbf16>, vector<32x16xbf16>, vector<8x16xf32> -> vector<8x16xf32>
    %c152 = arith.constant 152 : index
    %c0_32 = arith.constant 0 : index
    %116 = vector.load %arg3[%c152, %c0_32] : memref<248x16xbf16, #tpu.memory_space<vmem>>, vector<1x16xbf16>
    %117 = arith.extf %116 : vector<1x16xbf16> to vector<1x16xf32>
    %118 = vector.broadcast %117 : vector<1x16xf32> to vector<8x16xf32>
    %119 = arith.addf %115, %118 : vector<8x16xf32>
    %120 = arith.negf %119 : vector<8x16xf32>
    %121 = math.exp %120 : vector<8x16xf32>
    %cst_33 = arith.constant 1.000000e+00 : f32
    %122 = vector.broadcast %cst_33 : f32 to vector<8x16xf32>
    %123 = arith.addf %122, %121 : vector<8x16xf32>
    %124 = arith.divf %122, %123 : vector<8x16xf32>
    %125 = arith.mulf %124, %110 : vector<8x16xf32>
    %126 = arith.mulf %124, %111 : vector<8x16xf32>
    %127 = arith.mulf %124, %112 : vector<8x16xf32>
    %128 = tpu.concatenate %125, %2 in 1 : vector<8x16xf32>, vector<8x16xf32> -> vector<8x32xf32>
    %129 = tpu.concatenate %126, %3 in 1 : vector<8x16xf32>, vector<8x16xf32> -> vector<8x32xf32>
    %130 = tpu.concatenate %127, %4 in 1 : vector<8x16xf32>, vector<8x16xf32> -> vector<8x32xf32>
    %c0_34 = arith.constant 0 : index
    %c0_35 = arith.constant 0 : index
    %131 = vector.load %arg4[%c0_34, %c0_35] : memref<32x48xbf16, #tpu.memory_space<vmem>>, vector<32x48xbf16>
    %132 = tpu.concatenate %128, %129, %130 in 0 : vector<8x32xf32>, vector<8x32xf32>, vector<8x32xf32> -> vector<24x32xf32>
    %133 = arith.truncf %132 : vector<24x32xf32> to vector<24x32xbf16>
    %cst_36 = arith.constant dense<0.000000e+00> : vector<24x48xf32>
    %134 = tpu.matmul %133, %131, %cst_36 {dimension_numbers = #tpu.dot_dimension_numbers<[1], [0], [0], [1], [0, 0, 1, 1], [], []>} : vector<24x32xbf16>, vector<32x48xbf16>, vector<24x48xf32> -> vector<24x48xf32>
    %135 = vector.extract_strided_slice %134 {offsets = [0, 0], sizes = [8, 48], strides = [1, 1]} : vector<24x48xf32> to vector<8x48xf32>
    %136 = vector.extract_strided_slice %134 {offsets = [8, 0], sizes = [8, 48], strides = [1, 1]} : vector<24x48xf32> to vector<8x48xf32>
    %137 = vector.extract_strided_slice %134 {offsets = [16, 0], sizes = [8, 48], strides = [1, 1]} : vector<24x48xf32> to vector<8x48xf32>
    %138 = arith.mulf %135, %135 : vector<8x48xf32>
    %139 = arith.mulf %136, %136 : vector<8x48xf32>
    %140 = arith.addf %138, %139 : vector<8x48xf32>
    %141 = arith.mulf %137, %137 : vector<8x48xf32>
    %142 = arith.addf %140, %141 : vector<8x48xf32>
    %143 = math.sqrt %142 : vector<8x48xf32>
    %144 = tpu.concatenate %143, %105, %1 in 1 : vector<8x48xf32>, vector<8x32xf32>, vector<8x32xf32> -> vector<8x112xf32>
    %c112 = arith.constant 112 : index
    %c0_37 = arith.constant 0 : index
    %145 = vector.load %arg2[%c112, %c0_37] : memref<248x32xbf16, #tpu.memory_space<vmem>>, vector<112x32xbf16>
    %146 = arith.truncf %144 : vector<8x112xf32> to vector<8x112xbf16>
    %cst_38 = arith.constant dense<0.000000e+00> : vector<8x32xf32>
    %147 = tpu.matmul %146, %145, %cst_38 {dimension_numbers = #tpu.dot_dimension_numbers<[1], [0], [0], [1], [0, 0, 1, 1], [], []>} : vector<8x112xbf16>, vector<112x32xbf16>, vector<8x32xf32> -> vector<8x32xf32>
    %c224 = arith.constant 224 : index
    %c0_39 = arith.constant 0 : index
    %148 = vector.load %arg2[%c224, %c0_39] : memref<248x32xbf16, #tpu.memory_space<vmem>>, vector<1x32xbf16>
    %149 = arith.extf %148 : vector<1x32xbf16> to vector<1x32xf32>
    %150 = vector.broadcast %149 : vector<1x32xf32> to vector<8x32xf32>
    %151 = arith.addf %147, %150 : vector<8x32xf32>
    %c160 = arith.constant 160 : index
    %c0_40 = arith.constant 0 : index
    %152 = vector.load %arg3[%c160, %c0_40] : memref<248x16xbf16, #tpu.memory_space<vmem>>, vector<48x16xbf16>
    %153 = tpu.concatenate %135, %136, %137 in 0 : vector<8x48xf32>, vector<8x48xf32>, vector<8x48xf32> -> vector<24x48xf32>
    %154 = arith.truncf %153 : vector<24x48xf32> to vector<24x48xbf16>
    %cst_41 = arith.constant dense<0.000000e+00> : vector<24x16xf32>
    %155 = tpu.matmul %154, %152, %cst_41 {dimension_numbers = #tpu.dot_dimension_numbers<[1], [0], [0], [1], [0, 0, 1, 1], [], []>} : vector<24x48xbf16>, vector<48x16xbf16>, vector<24x16xf32> -> vector<24x16xf32>
    %156 = vector.extract_strided_slice %155 {offsets = [0, 0], sizes = [8, 16], strides = [1, 1]} : vector<24x16xf32> to vector<8x16xf32>
    %157 = vector.extract_strided_slice %155 {offsets = [8, 0], sizes = [8, 16], strides = [1, 1]} : vector<24x16xf32> to vector<8x16xf32>
    %158 = vector.extract_strided_slice %155 {offsets = [16, 0], sizes = [8, 16], strides = [1, 1]} : vector<24x16xf32> to vector<8x16xf32>
    %c208 = arith.constant 208 : index
    %c0_42 = arith.constant 0 : index
    %159 = vector.load %arg3[%c208, %c0_42] : memref<248x16xbf16, #tpu.memory_space<vmem>>, vector<32x16xbf16>
    %160 = arith.truncf %151 : vector<8x32xf32> to vector<8x32xbf16>
    %cst_43 = arith.constant dense<0.000000e+00> : vector<8x16xf32>
    %161 = tpu.matmul %160, %159, %cst_43 {dimension_numbers = #tpu.dot_dimension_numbers<[1], [0], [0], [1], [0, 0, 1, 1], [], []>} : vector<8x32xbf16>, vector<32x16xbf16>, vector<8x16xf32> -> vector<8x16xf32>
    %c240 = arith.constant 240 : index
    %c0_44 = arith.constant 0 : index
    %162 = vector.load %arg3[%c240, %c0_44] : memref<248x16xbf16, #tpu.memory_space<vmem>>, vector<1x16xbf16>
    %163 = arith.extf %162 : vector<1x16xbf16> to vector<1x16xf32>
    %164 = vector.broadcast %163 : vector<1x16xf32> to vector<8x16xf32>
    %165 = arith.addf %161, %164 : vector<8x16xf32>
    %166 = arith.negf %165 : vector<8x16xf32>
    %167 = math.exp %166 : vector<8x16xf32>
    %cst_45 = arith.constant 1.000000e+00 : f32
    %168 = vector.broadcast %cst_45 : f32 to vector<8x16xf32>
    %169 = arith.addf %168, %167 : vector<8x16xf32>
    %170 = arith.divf %168, %169 : vector<8x16xf32>
    %171 = arith.mulf %170, %156 : vector<8x16xf32>
    %172 = arith.mulf %170, %157 : vector<8x16xf32>
    %173 = arith.mulf %170, %158 : vector<8x16xf32>
    %174 = arith.negf %151 : vector<8x32xf32>
    %175 = math.exp %174 : vector<8x32xf32>
    %cst_46 = arith.constant 1.000000e+00 : f32
    %176 = vector.broadcast %cst_46 : f32 to vector<8x32xf32>
    %177 = arith.addf %176, %175 : vector<8x32xf32>
    %178 = arith.divf %176, %177 : vector<8x32xf32>
    %179 = arith.mulf %171, %171 : vector<8x16xf32>
    %180 = arith.mulf %172, %172 : vector<8x16xf32>
    %181 = arith.addf %179, %180 : vector<8x16xf32>
    %182 = arith.mulf %173, %173 : vector<8x16xf32>
    %183 = arith.addf %181, %182 : vector<8x16xf32>
    %184 = math.sqrt %183 : vector<8x16xf32>
    %185 = arith.negf %184 : vector<8x16xf32>
    %186 = math.exp %185 : vector<8x16xf32>
    %cst_47 = arith.constant 1.000000e+00 : f32
    %187 = vector.broadcast %cst_47 : f32 to vector<8x16xf32>
    %188 = arith.addf %187, %186 : vector<8x16xf32>
    %189 = arith.divf %187, %188 : vector<8x16xf32>
    %190 = arith.mulf %105, %178 : vector<8x32xf32>
    %cst_48 = arith.constant 1.000000e+00 : f32
    %191 = vector.broadcast %cst_48 : f32 to vector<8x32xf32>
    %192 = arith.subf %191, %178 : vector<8x32xf32>
    %193 = arith.mulf %1, %192 : vector<8x32xf32>
    %194 = arith.addf %190, %193 : vector<8x32xf32>
    %195 = arith.mulf %125, %189 : vector<8x16xf32>
    %cst_49 = arith.constant 1.000000e+00 : f32
    %196 = vector.broadcast %cst_49 : f32 to vector<8x16xf32>
    %197 = arith.subf %196, %189 : vector<8x16xf32>
    %198 = arith.mulf %2, %197 : vector<8x16xf32>
    %199 = arith.addf %195, %198 : vector<8x16xf32>
    %200 = arith.mulf %126, %189 : vector<8x16xf32>
    %cst_50 = arith.constant 1.000000e+00 : f32
    %201 = vector.broadcast %cst_50 : f32 to vector<8x16xf32>
    %202 = arith.subf %201, %189 : vector<8x16xf32>
    %203 = arith.mulf %3, %202 : vector<8x16xf32>
    %204 = arith.addf %200, %203 : vector<8x16xf32>
    %205 = arith.mulf %127, %189 : vector<8x16xf32>
    %cst_51 = arith.constant 1.000000e+00 : f32
    %206 = vector.broadcast %cst_51 : f32 to vector<8x16xf32>
    %207 = arith.subf %206, %189 : vector<8x16xf32>
    %208 = arith.mulf %4, %207 : vector<8x16xf32>
    %209 = arith.addf %205, %208 : vector<8x16xf32>
    %cst_52 = arith.constant dense<0.000000e+00> : vector<8xf32>
    %210 = vector.multi_reduction <add>, %194, %cst_52 [1] : vector<8x32xf32> to vector<8xf32>
    %211 = vector.shape_cast %210 : vector<8xf32> to vector<8x1xf32>
    %cst_53 = arith.constant 3.200000e+01 : f32
    %212 = vector.broadcast %cst_53 : f32 to vector<8x1xf32>
    %213 = arith.divf %211, %212 : vector<8x1xf32>
    %214 = vector.broadcast %213 : vector<8x1xf32> to vector<8x32xf32>
    %215 = arith.subf %194, %214 : vector<8x32xf32>
    %216 = arith.mulf %215, %215 : vector<8x32xf32>
    %cst_54 = arith.constant dense<0.000000e+00> : vector<8xf32>
    %217 = vector.multi_reduction <add>, %216, %cst_54 [1] : vector<8x32xf32> to vector<8xf32>
    %218 = vector.shape_cast %217 : vector<8xf32> to vector<8x1xf32>
    %cst_55 = arith.constant 3.200000e+01 : f32
    %219 = vector.broadcast %cst_55 : f32 to vector<8x1xf32>
    %220 = arith.divf %218, %219 : vector<8x1xf32>
    %cst_56 = arith.constant 9.99999974E-6 : f32
    %221 = vector.broadcast %cst_56 : f32 to vector<8x1xf32>
    %222 = arith.addf %220, %221 : vector<8x1xf32>
    %223 = math.rsqrt %222 : vector<8x1xf32>
    %224 = vector.broadcast %223 : vector<8x1xf32> to vector<8x32xf32>
    %225 = arith.mulf %215, %224 : vector<8x32xf32>
    %c232 = arith.constant 232 : index
    %c0_57 = arith.constant 0 : index
    %226 = vector.load %arg2[%c232, %c0_57] : memref<248x32xbf16, #tpu.memory_space<vmem>>, vector<1x32xbf16>
    %227 = arith.extf %226 : vector<1x32xbf16> to vector<1x32xf32>
    %228 = vector.broadcast %227 : vector<1x32xf32> to vector<8x32xf32>
    %229 = arith.mulf %225, %228 : vector<8x32xf32>
    %c240_58 = arith.constant 240 : index
    %c0_59 = arith.constant 0 : index
    %230 = vector.load %arg2[%c240_58, %c0_59] : memref<248x32xbf16, #tpu.memory_space<vmem>>, vector<1x32xbf16>
    %231 = arith.extf %230 : vector<1x32xbf16> to vector<1x32xf32>
    %232 = vector.broadcast %231 : vector<1x32xf32> to vector<8x32xf32>
    %233 = arith.addf %229, %232 : vector<8x32xf32>
    %234 = arith.mulf %199, %199 : vector<8x16xf32>
    %235 = arith.mulf %204, %204 : vector<8x16xf32>
    %236 = arith.addf %234, %235 : vector<8x16xf32>
    %237 = arith.mulf %209, %209 : vector<8x16xf32>
    %238 = arith.addf %236, %237 : vector<8x16xf32>
    %cst_60 = arith.constant dense<0.000000e+00> : vector<8xf32>
    %239 = vector.multi_reduction <add>, %238, %cst_60 [1] : vector<8x16xf32> to vector<8xf32>
    %240 = vector.shape_cast %239 : vector<8xf32> to vector<8x1xf32>
    %cst_61 = arith.constant 9.99999993E-9 : f32
    %241 = vector.broadcast %cst_61 : f32 to vector<8x1xf32>
    %242 = arith.addf %240, %241 : vector<8x1xf32>
    %cst_62 = arith.constant 1.600000e+01 : f32
    %243 = vector.broadcast %cst_62 : f32 to vector<8x1xf32>
    %244 = arith.divf %242, %243 : vector<8x1xf32>
    %245 = math.rsqrt %244 : vector<8x1xf32>
    %246 = vector.broadcast %245 : vector<8x1xf32> to vector<8x16xf32>
    %247 = arith.mulf %199, %246 : vector<8x16xf32>
    %248 = vector.broadcast %245 : vector<8x1xf32> to vector<8x16xf32>
    %249 = arith.mulf %204, %248 : vector<8x16xf32>
    %250 = vector.broadcast %245 : vector<8x1xf32> to vector<8x16xf32>
    %251 = arith.mulf %209, %250 : vector<8x16xf32>
    %cst_63 = arith.constant 0.000000e+00 : f32
    %252 = vector.broadcast %cst_63 : f32 to vector<8x48xf32>
    %253 = tpu.concatenate %233, %247, %249, %251, %252 in 1 : vector<8x32xf32>, vector<8x16xf32>, vector<8x16xf32>, vector<8x16xf32>, vector<8x48xf32> -> vector<8x128xf32>
    %c0_64 = arith.constant 0 : index
    %c0_65 = arith.constant 0 : index
    %254 = vector.load %arg5[%c0_64, %c0_65] : memref<8x128xf32, #tpu.memory_space<vmem>>, vector<8x128xf32>
    tpu.vector_store %arg5[%c0_64, %c0_65], %253 {strides = array<i32>} : memref<8x128xf32, #tpu.memory_space<vmem>>, vector<8x128xf32>,
    return
  }
  func.func @transform_0(%arg0: i32) -> (i32, i32) {
    %c0_i32 = arith.constant 0 : i32
    %c0_i32_0 = arith.constant 0 : i32
    return %arg0, %c0_i32 : i32, i32
  }
  func.func @transform_1(%arg0: i32) -> (i32, i32) {
    %c0_i32 = arith.constant 0 : i32
    %c0_i32_0 = arith.constant 0 : i32
    %c0_i32_1 = arith.constant 0 : i32
    return %c0_i32, %c0_i32_0 : i32, i32
  }
  func.func @transform_2(%arg0: i32) -> (i32, i32) {
    %c0_i32 = arith.constant 0 : i32
    %c0_i32_0 = arith.constant 0 : i32
    %c0_i32_1 = arith.constant 0 : i32
    return %c0_i32, %c0_i32_0 : i32, i32
  }
  func.func @transform_3(%arg0: i32) -> (i32, i32) {
    %c0_i32 = arith.constant 0 : i32
    %c0_i32_0 = arith.constant 0 : i32
    %c0_i32_1 = arith.constant 0 : i32
    return %c0_i32, %c0_i32_0 : i32, i32
  }
  func.func @transform_4(%arg0: i32) -> (i32, i32) {
    %c0_i32 = arith.constant 0 : i32
    %c0_i32_0 = arith.constant 0 : i32
    return %arg0, %c0_i32 : i32, i32
  }
}

</mosaic_0001>

<llo_original>
// kernel: tpu_custom_call.1
$region0: #{tpu_custom_call.1}
  #allocation0 [shape = 'u32[]', space=smem, size = 0x4, offset = 0x4, fixed_abs, tag = 'smem constant byte address 0x4 - core index']
  #allocation1 [shape = 'u32[72,128]{1,0:T(1,128)}', space=vmem, size = 0x9000, scoped, tag = 'internal scratch']
  %s0 = inlined_call_operand.vmem [shape: f32[16,128], index: 0, kind: input, shape index: {}]
  %s1 = inlined_call_operand.vmem [shape: bf16[248,32], index: 1, kind: input, shape index: {}]
  %s2 = inlined_call_operand.vmem [shape: bf16[248,16], index: 2, kind: input, shape index: {}]
  %s3 = inlined_call_operand.vmem [shape: bf16[32,48], index: 3, kind: input, shape index: {}]
  %s4 = inlined_call_operand.hbm [shape: f32[16,128], index: 4, kind: output, shape index: {}]
  %s5 = sld [smem:[#allocation0]]
  $region49: #{tpu_custom_call.1} parent=0
    _
  %s7 = ssub.s32 1, %s5
  %s8 = scalar_select 0, %s7, %s5
  $region1: #{tpu_custom_call.1} parent=0
    #allocation2 [shape = 'u8[8192]{0}', space=vmem, size = 0x2000, scoped, tag = 'output window, operand 0']
    #allocation3 [shape = 's32[2]{0}', space=sflag, size = 0x8, scoped, tag = 'scoped memory for tpu_custom_call.1']
    %9 = vsyncpa [#allocation3], 0
    %s10 = scalar_lea.sflag [#allocation3], 1
    %11 = vsyncpa %s10, 0
    loop: start=0, step=1, limit=4
    $region2: #{tpu_custom_call.1} parent=1 // loop_pre_header
      _
    $region3: #{tpu_custom_call.1} parent=1 // loop_header
      %s13 = sphi 0, %s17
      %p14 = scmp.ge.s32.totalorder %s13, 4
      %s23 = sphi 0, %s25
      %s26 = sphi 0, %s23
      %s27 = sphi 0, %s26
      %s43 = sphi 0, %s27
      %s47 = sphi 0, %s47
      %s49 = sphi 0, %s47
      %s50 = sphi 0, %s49
      %s64 = sphi 0, %s50
      %s68 = sphi 0, %s68
      %s70 = sphi 0, %s68
      %s71 = sphi 0, %s70
      %s85 = sphi 0, %s71
      %s89 = sphi 0, %s89
      %s91 = sphi 0, %s89
      %s92 = sphi 0, %s91
      %s106 = sphi 0, %s92
      %s112 = sphi 0, %s114
      %s115 = sphi 0, %s112
      %s116 = sphi 0, %s115
      %s132 = sphi 0, %s116
    $region4: #{tpu_custom_call.1} parent=1 // loop_header_branch
      %16 = sbr.rel (%p14) target = $region8
    $region5: #{tpu_custom_call.1} parent=1 // loop_body
      %s18 = ssub.s32 %s13, 1
      %s19 = ssub.s32 %s13, 2
      %s20 = sadd.s32 %s13, 1
      %s21 = ssub.s32 %s13, %s20
      %p22 = scmp.eq.s32.totalorder %s21, 0
      %s24 = sadd.s32 %s23, 1
      %s25 = scalar_select %p22, %s23, %s24
      %p28 = pneg %p22
      %p29 = scmp.eq.s32.totalorder %s13, 1
      %p30 = por %p28, %p29
      %p31 = scmp.ne.s32.totalorder %s23, %s26
      %p32 = scmp.eq.s32.totalorder %s13, 0
      %p33 = por %p31, %p32
      %p34 = scmp.ne.s32.totalorder %s23, %s26
      %p35 = scmp.eq.s32.totalorder %s18, 1
      %p36 = por %p34, %p35
      %p37 = scmp.ne.s32.totalorder %s26, %s27
      %p38 = scmp.eq.s32.totalorder %s18, 0
      %p39 = por %p37, %p38
      %p40 = scmp.ne.s32.totalorder %s26, %s27
      %p41 = scmp.eq.s32.totalorder %s19, 1
      %p42 = por %p40, %p41
      %p44 = scmp.ne.s32.totalorder %s27, %s43
      %p45 = scmp.eq.s32.totalorder %s19, 0
      %p46 = por %p44, %p45
      %s48 = sadd.s32 %s47, 1
      %p51 = scmp.eq.s32.totalorder %s13, 1
      %p52 = scmp.ne.s32.totalorder %s47, %s49
      %p53 = scmp.eq.s32.totalorder %s13, 0
      %p54 = por %p52, %p53
      %p55 = scmp.ne.s32.totalorder %s47, %s49
      %p56 = scmp.eq.s32.totalorder %s18, 1
      %p57 = por %p55, %p56
      %p58 = scmp.ne.s32.totalorder %s49, %s50
      %p59 = scmp.eq.s32.totalorder %s18, 0
      %p60 = por %p58, %p59
      %p61 = scmp.ne.s32.totalorder %s49, %s50
      %p62 = scmp.eq.s32.totalorder %s19, 1
      %p63 = por %p61, %p62
      %p65 = scmp.ne.s32.totalorder %s50, %s64
      %p66 = scmp.eq.s32.totalorder %s19, 0
      %p67 = por %p65, %p66
      %s69 = sadd.s32 %s68, 1
      %p72 = scmp.eq.s32.totalorder %s13, 1
      %p73 = scmp.ne.s32.totalorder %s68, %s70
      %p74 = scmp.eq.s32.totalorder %s13, 0
      %p75 = por %p73, %p74
      %p76 = scmp.ne.s32.totalorder %s68, %s70
      %p77 = scmp.eq.s32.totalorder %s18, 1
      %p78 = por %p76, %p77
      %p79 = scmp.ne.s32.totalorder %s70, %s71
      %p80 = scmp.eq.s32.totalorder %s18, 0
      %p81 = por %p79, %p80
      %p82 = scmp.ne.s32.totalorder %s70, %s71
      %p83 = scmp.eq.s32.totalorder %s19, 1
      %p84 = por %p82, %p83
      %p86 = scmp.ne.s32.totalorder %s71, %s85
      %p87 = scmp.eq.s32.totalorder %s19, 0
      %p88 = por %p86, %p87
      %s90 = sadd.s32 %s89, 1
      %p93 = scmp.eq.s32.totalorder %s13, 1
      %p94 = scmp.ne.s32.totalorder %s89, %s91
      %p95 = scmp.eq.s32.totalorder %s13, 0
      %p96 = por %p94, %p95
      %p97 = scmp.ne.s32.totalorder %s89, %s91
      %p98 = scmp.eq.s32.totalorder %s18, 1
      %p99 = por %p97, %p98
      %p100 = scmp.ne.s32.totalorder %s91, %s92
      %p101 = scmp.eq.s32.totalorder %s18, 0
      %p102 = por %p100, %p101
      %p103 = scmp.ne.s32.totalorder %s91, %s92
      %p104 = scmp.eq.s32.totalorder %s19, 1
      %p105 = por %p103, %p104
      %p107 = scmp.ne.s32.totalorder %s92, %s106
      %p108 = scmp.eq.s32.totalorder %s19, 0
      %p109 = por %p107, %p108
      %s110 = ssub.s32 %s13, %s20
      %p111 = scmp.eq.s32.totalorder %s110, 0
      %s113 = sadd.s32 %s112, 1
      %s114 = scalar_select %p111, %s112, %s113
      %p117 = pneg %p111
      %p118 = scmp.eq.s32.totalorder %s13, 1
      %p119 = por %p117, %p118
      %p120 = scmp.ne.s32.totalorder %s112, %s115
      %p121 = scmp.eq.s32.totalorder %s13, 0
      %p122 = por %p120, %p121
      %p123 = scmp.ne.s32.totalorder %s112, %s115
      %p124 = scmp.eq.s32.totalorder %s18, 1
      %p125 = por %p123, %p124
      %p126 = scmp.ne.s32.totalorder %s115, %s116
      %p127 = scmp.eq.s32.totalorder %s18, 0
      %p128 = por %p126, %p127
      %p129 = scmp.ne.s32.totalorder %s115, %s116
      %p130 = scmp.eq.s32.totalorder %s19, 1
      %p131 = por %p129, %p130
      %p133 = scmp.ne.s32.totalorder %s116, %s132
      %p134 = scmp.eq.s32.totalorder %s19, 0
      %p135 = por %p133, %p134
      %p136 = scmp.le.s32.totalorder 1, %s13
      %p137 = scmp.lt.s32.totalorder %s13, 3
      %p138 = pnand %p136, %p137
      %p139 = pneg %p138
      // Predicated region
      $region9: #{tpu_custom_call.1} parent=5 // pred_check
        _
      $region10: #{tpu_custom_call.1} parent=5 // pred_check_branch
        %141 = sbr.rel (%p138) target = $region12
      $region11: #{tpu_custom_call.1} parent=5 // pred_region
        %s142 = ssub.s32 %s13, 1
        // Predicated region
        $region13: #{tpu_custom_call.1} parent=11 // pred_check
          %p143 = pneg %p60
        $region14: #{tpu_custom_call.1} parent=11 // pred_check_branch
          %145 = sbr.rel (%p143) target = $region16
        $region15: #{tpu_custom_call.1} parent=11 // pred_region
          _
        $region16: #{tpu_custom_call.1} parent=11 // pred_fallthru
          _
        // Predicated region
        $region17: #{tpu_custom_call.1} parent=11 // pred_check
          %p146 = pneg %p81
        $region18: #{tpu_custom_call.1} parent=11 // pred_check_branch
          %148 = sbr.rel (%p146) target = $region20
        $region19: #{tpu_custom_call.1} parent=11 // pred_region
          _
        $region20: #{tpu_custom_call.1} parent=11 // pred_fallthru
          _
        // Predicated region
        $region21: #{tpu_custom_call.1} parent=11 // pred_check
          %p149 = pneg %p102
        $region22: #{tpu_custom_call.1} parent=11 // pred_check_branch
          %151 = sbr.rel (%p149) target = $region24
        $region23: #{tpu_custom_call.1} parent=11 // pred_region
          _
        $region24: #{tpu_custom_call.1} parent=11 // pred_fallthru
          _
      $region12: #{tpu_custom_call.1} parent=5 // pred_fallthru
        _
      %p152 = scmp.lt.s32.totalorder %s13, 2
      // Predicated region
      $region25: #{tpu_custom_call.1} parent=5 // pred_check
        %p153 = pneg %p152
      $region26: #{tpu_custom_call.1} parent=5 // pred_check_branch
        %155 = sbr.rel (%p153) target = $region28
      $region27: #{tpu_custom_call.1} parent=5 // pred_region
        // Predicated region
        $region29: #{tpu_custom_call.1} parent=27 // pred_check
          %p156 = pneg %p33
        $region30: #{tpu_custom_call.1} parent=27 // pred_check_branch
          %158 = sbr.rel (%p156) target = $region32
        $region31: #{tpu_custom_call.1} parent=27 // pred_region
          %p159 = scmp.lt.s32.totalorder %s13, 1
          %s160 = scalar_select %p159, %s13, 1
          %s161 = smul.addr %s160, 8
          %s162 = scalar_lea.vmem %s0, %s161
        $region32: #{tpu_custom_call.1} parent=27 // pred_fallthru
          _
      $region28: #{tpu_custom_call.1} parent=5 // pred_fallthru
        _
      %p163 = scmp.le.s32.totalorder 1, %s13
      %p164 = scmp.lt.s32.totalorder %s13, 3
      %p165 = pnand %p163, %p164
      %p166 = pneg %p165
      // Predicated region
      $region33: #{tpu_custom_call.1} parent=5 // pred_check
        _
      $region34: #{tpu_custom_call.1} parent=5 // pred_check_branch
        %168 = sbr.rel (%p165) target = $region36
      $region35: #{tpu_custom_call.1} parent=5 // pred_region
        %s169 = ssub.s32 %s13, 1
        %p170 = scmp.lt.s32.totalorder %s18, 1
        %s171 = scalar_select %p170, %s18, 1
        %s172 = smul.addr %s171, 8
        %s173 = scalar_lea.vmem %s0, %s172
        %p174 = pneg %p39
        %p175 = pneg %p36
        %p176 = pneg %p60
        %p177 = pneg %p57
        %p178 = pneg %p81
        %p179 = pneg %p78
        %p180 = pneg %p102
        %p181 = pneg %p99
        %p182 = pneg %p128
        %p183 = pneg %p125
        %s184 = sand.u32 %s115, 1
        %s185 = scalar_lea.sflag [#allocation3], %s184
        %s186 = sand.u32 %s115, 1
        %s187 = smul.addr %s186, 8
        %s188 = scalar_lea.vmem [#allocation2], %s187
        %p189 = scmp.lt.s32.totalorder %s18, 1
        %s190 = scalar_select %p189, %s18, 1
        %s191 = smul.addr %s190, 8
        %s192 = scalar_lea.vmem %s0, %s191
        %v194 = vld [vmem:[%s192] sm:$0xff]
        %v195 = vld [vmem:[%s2] sm:$0xf]
        %v196 = vld [vmem:[%s2 + $0x4] sm:$0xf]
        %198 = vrot.lane.b32.xlu0 %v194, 112
        %v199 = vpop.permute.xlu0 %198
        %201 = vrot.lane.b32.xlu0 %v194, 96
        %v202 = vpop.permute.xlu0 %201
        %v204 = vpack.c.bf16 %v199, %v194
        %v205 = vpack.c.bf16 %v202, %v202
        %208 = vrot.lane.b32.xlu0 %v204, 96
        %v209 = vpop.permute.xlu0 %208
        %210 = vrot.lane.b32.xlu0 %v205, 96
        %v211 = vpop.permute.xlu0 %210
        %v214 = vunpack.c.l.b16 %v195
        %v215 = vunpack.c.l.b16 %v196
        %v216 = vpack.c.b16 %v215, %v214
        %vm218 = vcmask 130048
        %v220 = vsel %vm218, %v209, 0
        %v223 = vsel %vm218, %v211, 0
        %225 = vmatpush.bf16.msra.mxu0 0
        %226 = vmatpush.bf16.msra.mxu0 0
        %227 = vmatpush.bf16.msra.mxu0 0
        %228 = vmatpush.bf16.msra.mxu0 0
        %229 = vmatpush.bf16.msra.mxu0 0
        %230 = vmatpush.bf16.msra.mxu0 0
        %231 = vmatpush.bf16.msra.mxu0 0
        %232 = vmatpush.bf16.msra.mxu0 %v216
        %233 = vmatmul.bf16.gmra.mxu0 %v220
        %v234 = vpop.f32.mrf.mxu0
        %v235 = vadd.f32 0.0, %v234
        %v236 = vpop.f32.mrf.mxu0
        %v237 = vadd.f32 0.0, %v236
        %238 = vmatmul.bf16.gmra.mxu0 %v223
        %v239 = vpop.f32.mrf.mxu0
        %v240 = vadd.f32 0.0, %v239
        %v241 = vpop.f32.mrf.mxu0
        %242 = vdwg.mxu0
        %v243 = vmul.f32 %v235, %v235
        %v244 = vmul.f32 %v237, %v237
        %v245 = vadd.f32 %v243, %v244
        %v246 = vmul.f32 %v240, %v240
        %v247 = vadd.f32 %v245, %v246
        %v248 = vrsqrt.pop %v247
        %v249 = vmul.f32 %v248, %v247
        %v250 = vmul.f32 %v249, %v248
        %v251 = vmul.f32 0.5, %v250
        %v252 = vsub.f32 1.5, %v251
        %v253 = vmul.f32 %v248, %v252
        %v254 = vmul.f32 %v247, %v253
        %vm255 = vcmp.eq.f32.partialorder %v247, inf
        %v256 = vsel %vm255, %v247, %v254
        %vm257 = vcmp.eq.f32.partialorder %v247, 0.0
        %v258 = vand.u32 %v247, 2147483648
        %v259 = vsel %vm257, %v258, %v256
        %260 = vrot.lane.b32.xlu0 %v194, 16
        %v261 = vpop.permute.xlu0 %260
        %v263 = vsel %vm218, %v259, %v261
        %v264 = vld [vmem:[%s1] sm:$0xf]
        %v265 = vld [vmem:[%s1 + $0x4] sm:$0xf]
        %v266 = vld [vmem:[%s1 + $0x8] sm:$0xf]
        %v267 = vld [vmem:[%s1 + $0xc] sm:$0xf]
        %v268 = vld [vmem:[%s1 + $0x10] sm:$0xf]
        %v269 = vld [vmem:[%s1 + $0x14] sm:$0xf]
        %v270 = vpack.c.bf16 %v263, %v263
        %v271 = vld [vmem:[%s1 + $0x18] sm:$0x1]
        %v272 = vunpack.c.l.bf16 %v271
        %v273 = vperm.slane %v272, 0
        %v280 = vunpack.c.l.b16 %v264
        %v281 = vunpack.c.l.b16 %v265
        %v282 = vunpack.c.l.b16 %v266
        %v283 = vunpack.c.l.b16 %v267
        %v284 = vunpack.c.l.b16 %v268
        %v285 = vunpack.c.l.b16 %v269
        %v286 = vpack.c.b16 %v281, %v280
        %v287 = vpack.c.b16 %v283, %v282
        %v288 = vpack.c.b16 %v285, %v284
        %vm292 = vcmask 392192
        %v294 = vsel %vm292, %v270, 0
        %296 = vmatpush.bf16.msra.mxu0 0
        %297 = vmatpush.bf16.msra.mxu0 0
        %298 = vmatpush.bf16.msra.mxu0 0
        %299 = vmatpush.bf16.msra.mxu0 0
        %300 = vmatpush.bf16.msra.mxu0 0
        %301 = vmatpush.bf16.msra.mxu0 %v288
        %302 = vmatpush.bf16.msra.mxu0 %v287
        %303 = vmatpush.bf16.msra.mxu0 %v286
        %304 = vmatmul.bf16.gmra.mxu0 %v294
        %v305 = vpop.f32.mrf.mxu0
        %v306 = vadd.f32 %v273, %v305
        %v307 = vpop.f32.mrf.mxu0
        %308 = vdwg.mxu0
        %v309 = vld [vmem:[%s2 + $0x8] sm:$0xf]
        %v310 = vld [vmem:[%s2 + $0xc] sm:$0xf]
        %v311 = vpack.c.bf16 %v237, %v235
        %v312 = vpack.c.bf16 %v240, %v240
        %v315 = vunpack.c.l.b16 %v309
        %v316 = vunpack.c.l.b16 %v310
        %v317 = vpack.c.b16 %v316, %v315
        %v320 = vsel %vm218, %v311, 0
        %v323 = vsel %vm218, %v312, 0
        %325 = vmatpush.bf16.msra.mxu0 0
        %326 = vmatpush.bf16.msra.mxu0 0
        %327 = vmatpush.bf16.msra.mxu0 0
        %328 = vmatpush.bf16.msra.mxu0 0
        %329 = vmatpush.bf16.msra.mxu0 0
        %330 = vmatpush.bf16.msra.mxu0 0
        %331 = vmatpush.bf16.msra.mxu0 0
        %332 = vmatpush.bf16.msra.mxu0 %v317
        %333 = vmatmul.bf16.gmra.mxu0 %v320
        %v334 = vpop.f32.mrf.mxu0
        %v335 = vadd.f32 0.0, %v334
        %v336 = vpop.f32.mrf.mxu0
        %v337 = vadd.f32 0.0, %v336
        %338 = vmatmul.bf16.gmra.mxu0 %v323
        %v339 = vpop.f32.mrf.mxu0
        %v340 = vadd.f32 0.0, %v339
        %v341 = vpop.f32.mrf.mxu0
        %342 = vdwg.mxu0
        %v343 = vld [vmem:[%s2 + $0x18] sm:$0xf]
        %v344 = vld [vmem:[%s2 + $0x1c] sm:$0xf]
        %v345 = vld [vmem:[%s2 + $0x20] sm:$0xf]
        %v346 = vld [vmem:[%s2 + $0x24] sm:$0xf]
        %v347 = vpack.c.bf16 %v306, %v306
        %v348 = vld [vmem:[%s2 + $0x28] sm:$0x1]
        %v349 = vunpack.c.l.bf16 %v348
        %v350 = vperm.slane %v349, 0
        %v355 = vunpack.c.l.b16 %v343
        %v356 = vunpack.c.l.b16 %v344
        %v357 = vunpack.c.l.b16 %v345
        %v358 = vunpack.c.l.b16 %v346
        %v359 = vpack.c.b16 %v356, %v355
        %v360 = vpack.c.b16 %v358, %v357
        %vm363 = vcmask 261120
        %v365 = vsel %vm363, %v347, 0
        %367 = vmatpush.bf16.msra.mxu0 0
        %368 = vmatpush.bf16.msra.mxu0 0
        %369 = vmatpush.bf16.msra.mxu0 0
        %370 = vmatpush.bf16.msra.mxu0 0
        %371 = vmatpush.bf16.msra.mxu0 0
        %372 = vmatpush.bf16.msra.mxu0 0
        %373 = vmatpush.bf16.msra.mxu0 %v360
        %374 = vmatpush.bf16.msra.mxu0 %v359
        %375 = vmatmul.bf16.gmra.mxu0 %v365
        %v376 = vpop.f32.mrf.mxu0
        %v377 = vadd.f32 %v350, %v376
        %v378 = vpop.f32.mrf.mxu0
        %379 = vdwg.mxu0
        %v380 = vxor.u32 %v377, 2147483648
        %v381 = vmul.f32 %v380, 1.442695
        %v382 = vpow.pop %v381
        %v383 = vadd.f32 %v382, 1.0
        %v384 = vrcp.pop %v383
        %v385 = vmul.f32 %v383, %v384
        %v386 = vsub.f32 1.0, %v385
        %v387 = vmul.f32 %v384, %v386
        %v388 = vadd.f32 %v384, %v387
        %vm389 = vweird.f32 %v383
        %vm390 = vweird.f32 %v384
        %vm391 = vmor %vm389, %vm390
        %v392 = vsel %vm391, %v384, %v388
        %v393 = vand.u32 2147483647, %v383
        %vm394 = vcmp.eq.f32.partialorder %v393, 8.507059e+37
        %v395 = vand.u32 %v383, 2147483648
        %v396 = vor.u32 1.1754944e-38, %v395
        %v397 = vsel %vm394, %v396, %v392
        %v398 = vmul.f32 1.0, %v397
        %v399 = vmul.f32 %v398, %v335
        %v400 = vmul.f32 %v398, %v337
        %v401 = vmul.f32 %v398, %v340
        %v402 = vld [vmem:[%s2 + $0x10] sm:$0xf]
        %v403 = vld [vmem:[%s2 + $0x14] sm:$0xf]
        %v404 = vpack.c.bf16 %v400, %v399
        %v405 = vpack.c.bf16 %v401, %v401
        %v408 = vunpack.c.l.b16 %v402
        %v409 = vunpack.c.l.b16 %v403
        %v410 = vpack.c.b16 %v409, %v408
        %v413 = vsel %vm218, %v404, 0
        %v416 = vsel %vm218, %v405, 0
        %418 = vmatpush.bf16.msra.mxu0 0
        %419 = vmatpush.bf16.msra.mxu0 0
        %420 = vmatpush.bf16.msra.mxu0 0
        %421 = vmatpush.bf16.msra.mxu0 0
        %422 = vmatpush.bf16.msra.mxu0 0
        %423 = vmatpush.bf16.msra.mxu0 0
        %424 = vmatpush.bf16.msra.mxu0 0
        %425 = vmatpush.bf16.msra.mxu0 %v410
        %426 = vmatmul.bf16.gmra.mxu0 %v413
        %v427 = vpop.f32.mrf.mxu0
        %v428 = vadd.f32 0.0, %v427
        %v429 = vpop.f32.mrf.mxu0
        %v430 = vadd.f32 0.0, %v429
        %431 = vmatmul.bf16.gmra.mxu0 %v416
        %v432 = vpop.f32.mrf.mxu0
        %v433 = vadd.f32 0.0, %v432
        %v434 = vpop.f32.mrf.mxu0
        %435 = vdwg.mxu0
        %v436 = vmul.f32 %v399, %v428
        %v437 = vmul.f32 %v400, %v430
        %v438 = vadd.f32 %v436, %v437
        %v439 = vmul.f32 %v401, %v433
        %v440 = vadd.f32 %v438, %v439
        %v441 = vmul.f32 %v428, %v428
        %v442 = vmul.f32 %v430, %v430
        %v443 = vadd.f32 %v441, %v442
        %v444 = vmul.f32 %v433, %v433
        %v445 = vadd.f32 %v443, %v444
        %v446 = vadd.f32 %v445, 1e-08
        %v447 = vrcp.pop %v446
        %v448 = vmul.f32 %v446, %v447
        %v449 = vsub.f32 1.0, %v448
        %v450 = vmul.f32 %v447, %v449
        %v451 = vadd.f32 %v447, %v450
        %vm452 = vweird.f32 %v446
        %vm453 = vweird.f32 %v447
        %vm454 = vmor %vm452, %vm453
        %v455 = vsel %vm454, %v447, %v451
        %v456 = vand.u32 2147483647, %v446
        %vm457 = vcmp.eq.f32.partialorder %v456, 8.507059e+37
        %v458 = vand.u32 %v446, 2147483648
        %v459 = vor.u32 1.1754944e-38, %v458
        %v460 = vsel %vm457, %v459, %v455
        %v461 = vmul.f32 %v440, %v460
        %vm462 = vcmp.ge.f32.partialorder %v440, 0.0
        %v463 = vmul.f32 %v461, 0.99
        %v464 = vsel %vm462, 0.0, %v463
        %v465 = vmul.f32 %v464, %v428
        %v466 = vsub.f32 %v399, %v465
        %v467 = vmul.f32 %v464, %v430
        %v468 = vsub.f32 %v400, %v467
        %v469 = vmul.f32 %v464, %v433
        %v470 = vsub.f32 %v401, %v469
        %vm471 = vcmp.ge.f32.partialorder %v306, 0.0
        %v472 = vmul.f32 %v306, 0.01
        %v473 = vsel %vm471, %v306, %v472
        %v474 = vld [vmem:[%s2 + $0x2c] sm:$0xf]
        %v475 = vld [vmem:[%s2 + $0x30] sm:$0xf]
        %v476 = vpack.c.bf16 %v468, %v466
        %v477 = vpack.c.bf16 %v470, %v470
        %v480 = vunpack.c.l.b16 %v474
        %v481 = vunpack.c.l.b16 %v475
        %v482 = vpack.c.b16 %v481, %v480
        %v485 = vsel %vm218, %v476, 0
        %v488 = vsel %vm218, %v477, 0
        %490 = vmatpush.bf16.msra.mxu0 0
        %491 = vmatpush.bf16.msra.mxu0 0
        %492 = vmatpush.bf16.msra.mxu0 0
        %493 = vmatpush.bf16.msra.mxu0 0
        %494 = vmatpush.bf16.msra.mxu0 0
        %495 = vmatpush.bf16.msra.mxu0 0
        %496 = vmatpush.bf16.msra.mxu0 0
        %497 = vmatpush.bf16.msra.mxu0 %v482
        %498 = vmatmul.bf16.gmra.mxu0 %v485
        %v499 = vpop.f32.mrf.mxu0
        %v500 = vadd.f32 0.0, %v499
        %v501 = vpop.f32.mrf.mxu0
        %v502 = vadd.f32 0.0, %v501
        %503 = vmatmul.bf16.gmra.mxu0 %v488
        %v504 = vpop.f32.mrf.mxu0
        %v505 = vadd.f32 0.0, %v504
        %v506 = vpop.f32.mrf.mxu0
        %507 = vdwg.mxu0
        %v508 = vmul.f32 %v500, %v500
        %v509 = vmul.f32 %v502, %v502
        %v510 = vadd.f32 %v508, %v509
        %v511 = vmul.f32 %v505, %v505
        %v512 = vadd.f32 %v510, %v511
        %v513 = vrsqrt.pop %v512
        %v514 = vmul.f32 %v513, %v512
        %v515 = vmul.f32 %v514, %v513
        %v516 = vmul.f32 0.5, %v515
        %v517 = vsub.f32 1.5, %v516
        %v518 = vmul.f32 %v513, %v517
        %v519 = vmul.f32 %v512, %v518
        %vm520 = vcmp.eq.f32.partialorder %v512, inf
        %v521 = vsel %vm520, %v512, %v519
        %vm522 = vcmp.eq.f32.partialorder %v512, 0.0
        %v523 = vand.u32 %v512, 2147483648
        %v524 = vsel %vm522, %v523, %v521
        %526 = vrot.lane.b32.xlu0 %v473, 16
        %v527 = vpop.permute.xlu0 %526
        %v529 = vsel %vm218, %v524, %v527
        %v530 = vld [vmem:[%s1 + $0x1c] sm:$0xf]
        %v531 = vld [vmem:[%s1 + $0x20] sm:$0xf]
        %v532 = vld [vmem:[%s1 + $0x24] sm:$0xf]
        %v533 = vld [vmem:[%s1 + $0x28] sm:$0xf]
        %v534 = vld [vmem:[%s1 + $0x2c] sm:$0xf]
        %v535 = vld [vmem:[%s1 + $0x30] sm:$0xf]
        %v536 = vpack.c.bf16 %v529, %v529
        %v537 = vld [vmem:[%s1 + $0x34] sm:$0x1]
        %v538 = vunpack.c.l.bf16 %v537
        %v539 = vperm.slane %v538, 0
        %v546 = vunpack.c.l.b16 %v530
        %v547 = vunpack.c.l.b16 %v531
        %v548 = vunpack.c.l.b16 %v532
        %v549 = vunpack.c.l.b16 %v533
        %v550 = vunpack.c.l.b16 %v534
        %v551 = vunpack.c.l.b16 %v535
        %v552 = vpack.c.b16 %v547, %v546
        %v553 = vpack.c.b16 %v549, %v548
        %v554 = vpack.c.b16 %v551, %v550
        %v559 = vsel %vm292, %v536, 0
        %561 = vmatpush.bf16.msra.mxu0 0
        %562 = vmatpush.bf16.msra.mxu0 0
        %563 = vmatpush.bf16.msra.mxu0 0
        %564 = vmatpush.bf16.msra.mxu0 0
        %565 = vmatpush.bf16.msra.mxu0 0
        %566 = vmatpush.bf16.msra.mxu0 %v554
        %567 = vmatpush.bf16.msra.mxu0 %v553
        %568 = vmatpush.bf16.msra.mxu0 %v552
        %569 = vmatmul.bf16.gmra.mxu0 %v559
        %v570 = vpop.f32.mrf.mxu0
        %v571 = vadd.f32 %v539, %v570
        %v572 = vpop.f32.mrf.mxu0
        %573 = vdwg.mxu0
        %v574 = vld [vmem:[%s2 + $0x34] sm:$0xf]
        %v575 = vld [vmem:[%s2 + $0x38] sm:$0xf]
        %v576 = vpack.c.bf16 %v502, %v500
        %v577 = vpack.c.bf16 %v505, %v505
        %v580 = vunpack.c.l.b16 %v574
        %v581 = vunpack.c.l.b16 %v575
        %v582 = vpack.c.b16 %v581, %v580
        %v585 = vsel %vm218, %v576, 0
        %v588 = vsel %vm218, %v577, 0
        %590 = vmatpush.bf16.msra.mxu0 0
        %591 = vmatpush.bf16.msra.mxu0 0
        %592 = vmatpush.bf16.msra.mxu0 0
        %593 = vmatpush.bf16.msra.mxu0 0
        %594 = vmatpush.bf16.msra.mxu0 0
        %595 = vmatpush.bf16.msra.mxu0 0
        %596 = vmatpush.bf16.msra.mxu0 0
        %597 = vmatpush.bf16.msra.mxu0 %v582
        %598 = vmatmul.bf16.gmra.mxu0 %v585
        %v599 = vpop.f32.mrf.mxu0
        %v600 = vadd.f32 0.0, %v599
        %v601 = vpop.f32.mrf.mxu0
        %v602 = vadd.f32 0.0, %v601
        %603 = vmatmul.bf16.gmra.mxu0 %v588
        %v604 = vpop.f32.mrf.mxu0
        %v605 = vadd.f32 0.0, %v604
        %v606 = vpop.f32.mrf.mxu0
        %607 = vdwg.mxu0
        %v608 = vld [vmem:[%s2 + $0x3c] sm:$0xf]
        %v609 = vld [vmem:[%s2 + $0x40] sm:$0xf]
        %v610 = vld [vmem:[%s2 + $0x44] sm:$0xf]
        %v611 = vld [vmem:[%s2 + $0x48] sm:$0xf]
        %v612 = vpack.c.bf16 %v571, %v571
        %v613 = vld [vmem:[%s2 + $0x4c] sm:$0x1]
        %v614 = vunpack.c.l.bf16 %v613
        %v615 = vperm.slane %v614, 0
        %v620 = vunpack.c.l.b16 %v608
        %v621 = vunpack.c.l.b16 %v609
        %v622 = vunpack.c.l.b16 %v610
        %v623 = vunpack.c.l.b16 %v611
        %v624 = vpack.c.b16 %v621, %v620
        %v625 = vpack.c.b16 %v623, %v622
        %v629 = vsel %vm363, %v612, 0
        %631 = vmatpush.bf16.msra.mxu0 0
        %632 = vmatpush.bf16.msra.mxu0 0
        %633 = vmatpush.bf16.msra.mxu0 0
        %634 = vmatpush.bf16.msra.mxu0 0
        %635 = vmatpush.bf16.msra.mxu0 0
        %636 = vmatpush.bf16.msra.mxu0 0
        %637 = vmatpush.bf16.msra.mxu0 %v625
        %638 = vmatpush.bf16.msra.mxu0 %v624
        %639 = vmatmul.bf16.gmra.mxu0 %v629
        %v640 = vpop.f32.mrf.mxu0
        %v641 = vadd.f32 %v615, %v640
        %v642 = vpop.f32.mrf.mxu0
        %643 = vdwg.mxu0
        %v644 = vxor.u32 %v641, 2147483648
        %v645 = vmul.f32 %v644, 1.442695
        %v646 = vpow.pop %v645
        %v647 = vadd.f32 %v646, 1.0
        %v648 = vrcp.pop %v647
        %v649 = vmul.f32 %v647, %v648
        %v650 = vsub.f32 1.0, %v649
        %v651 = vmul.f32 %v648, %v650
        %v652 = vadd.f32 %v648, %v651
        %vm653 = vweird.f32 %v647
        %vm654 = vweird.f32 %v648
        %vm655 = vmor %vm653, %vm654
        %v656 = vsel %vm655, %v648, %v652
        %v657 = vand.u32 2147483647, %v647
        %vm658 = vcmp.eq.f32.partialorder %v657, 8.507059e+37
        %v659 = vand.u32 %v647, 2147483648
        %v660 = vor.u32 1.1754944e-38, %v659
        %v661 = vsel %vm658, %v660, %v656
        %v662 = vmul.f32 1.0, %v661
        %v663 = vmul.f32 %v662, %v600
        %v664 = vmul.f32 %v662, %v602
        %v665 = vmul.f32 %v662, %v605
        %v666 = vsel %vm218, %v663, %v199
        %v667 = vsel %vm218, %v664, %v202
        %668 = vrot.lane.b32.xlu0 %v194, 80
        %v669 = vpop.permute.xlu0 %668
        %v671 = vsel %vm218, %v665, %v669
        %v672 = vld [vmem:[%s3] sm:$0xf]
        %v673 = vld [vmem:[%s3 + $0x4] sm:$0xf]
        %v674 = vld [vmem:[%s3 + $0x8] sm:$0xf]
        %v675 = vld [vmem:[%s3 + $0xc] sm:$0xf]
        %v676 = vpack.c.bf16 %v667, %v666
        %v677 = vpack.c.bf16 %v671, %v671
        %v682 = vunpack.c.l.b16 %v672
        %v683 = vunpack.c.l.b16 %v673
        %v684 = vunpack.c.l.b16 %v674
        %v685 = vunpack.c.l.b16 %v675
        %v686 = vpack.c.b16 %v683, %v682
        %v687 = vpack.c.b16 %v685, %v684
        %v691 = vsel %vm363, %v676, 0
        %v694 = vsel %vm363, %v677, 0
        %696 = vmatpush.bf16.msra.mxu0 0
        %697 = vmatpush.bf16.msra.mxu0 0
        %698 = vmatpush.bf16.msra.mxu0 0
        %699 = vmatpush.bf16.msra.mxu0 0
        %700 = vmatpush.bf16.msra.mxu0 0
        %701 = vmatpush.bf16.msra.mxu0 0
        %702 = vmatpush.bf16.msra.mxu0 %v687
        %703 = vmatpush.bf16.msra.mxu0 %v686
        %704 = vmatmul.bf16.gmra.mxu0 %v691
        %v705 = vpop.f32.mrf.mxu0
        %v706 = vadd.f32 0.0, %v705
        %v707 = vpop.f32.mrf.mxu0
        %v708 = vadd.f32 0.0, %v707
        %709 = vmatmul.bf16.gmra.mxu0 %v694
        %v710 = vpop.f32.mrf.mxu0
        %v711 = vadd.f32 0.0, %v710
        %v712 = vpop.f32.mrf.mxu0
        %713 = vdwg.mxu0
        %v714 = vmul.f32 %v706, %v706
        %v715 = vmul.f32 %v708, %v708
        %v716 = vadd.f32 %v714, %v715
        %v717 = vmul.f32 %v711, %v711
        %v718 = vadd.f32 %v716, %v717
        %v719 = vrsqrt.pop %v718
        %v720 = vmul.f32 %v719, %v718
        %v721 = vmul.f32 %v720, %v719
        %v722 = vmul.f32 0.5, %v721
        %v723 = vsub.f32 1.5, %v722
        %v724 = vmul.f32 %v719, %v723
        %v725 = vmul.f32 %v718, %v724
        %vm726 = vcmp.eq.f32.partialorder %v718, inf
        %v727 = vsel %vm726, %v718, %v725
        %vm728 = vcmp.eq.f32.partialorder %v718, 0.0
        %v729 = vand.u32 %v718, 2147483648
        %v730 = vsel %vm728, %v729, %v727
        %732 = vrot.lane.b32.xlu0 %v571, 48
        %v733 = vpop.permute.xlu0 %732
        %v735 = vsel %vm292, %v730, %v733
        %vm736 = vcmask 654336
        %v737 = vsel %vm736, %v735, %v669
        %v738 = vld [vmem:[%s1 + $0x38] sm:$0xf]
        %v739 = vld [vmem:[%s1 + $0x3c] sm:$0xf]
        %v740 = vld [vmem:[%s1 + $0x40] sm:$0xf]
        %v741 = vld [vmem:[%s1 + $0x44] sm:$0xf]
        %v742 = vld [vmem:[%s1 + $0x48] sm:$0xf]
        %v743 = vld [vmem:[%s1 + $0x4c] sm:$0xf]
        %v744 = vld [vmem:[%s1 + $0x50] sm:$0xf]
        %v745 = vld [vmem:[%s1 + $0x54] sm:$0xf]
        %v746 = vld [vmem:[%s1 + $0x58] sm:$0xf]
        %v747 = vld [vmem:[%s1 + $0x5c] sm:$0xf]
        %v748 = vld [vmem:[%s1 + $0x60] sm:$0xf]
        %v749 = vld [vmem:[%s1 + $0x64] sm:$0xf]
        %v750 = vld [vmem:[%s1 + $0x68] sm:$0xf]
        %v751 = vld [vmem:[%s1 + $0x6c] sm:$0xf]
        %v752 = vpack.c.bf16 %v737, %v737
        %v753 = vld [vmem:[%s1 + $0x70] sm:$0x1]
        %v754 = vunpack.c.l.bf16 %v753
        %v755 = vperm.slane %v754, 0
        %v770 = vunpack.c.l.b16 %v738
        %v771 = vunpack.c.l.b16 %v739
        %v772 = vunpack.c.l.b16 %v740
        %v773 = vunpack.c.l.b16 %v741
        %v774 = vunpack.c.l.b16 %v742
        %v775 = vunpack.c.l.b16 %v743
        %v776 = vunpack.c.l.b16 %v744
        %v777 = vunpack.c.l.b16 %v745
        %v778 = vunpack.c.l.b16 %v746
        %v779 = vunpack.c.l.b16 %v747
        %v780 = vunpack.c.l.b16 %v748
        %v781 = vunpack.c.l.b16 %v749
        %v782 = vunpack.c.l.b16 %v750
        %v783 = vunpack.c.l.b16 %v751
        %v784 = vpack.c.b16 %v771, %v770
        %v785 = vpack.c.b16 %v773, %v772
        %v786 = vpack.c.b16 %v775, %v774
        %v787 = vpack.c.b16 %v777, %v776
        %v788 = vpack.c.b16 %v779, %v778
        %v789 = vpack.c.b16 %v781, %v780
        %v790 = vpack.c.b16 %v783, %v782
        %vm798 = vcmask 916480
        %v800 = vsel %vm798, %v752, 0
        %802 = vmatpush.bf16.msra.mxu0 0
        %803 = vmatpush.bf16.msra.mxu0 %v790
        %804 = vmatpush.bf16.msra.mxu0 %v789
        %805 = vmatpush.bf16.msra.mxu0 %v788
        %806 = vmatpush.bf16.msra.mxu0 %v787
        %807 = vmatpush.bf16.msra.mxu0 %v786
        %808 = vmatpush.bf16.msra.mxu0 %v785
        %809 = vmatpush.bf16.msra.mxu0 %v784
        %810 = vmatmul.bf16.gmra.mxu0 %v800
        %v811 = vpop.f32.mrf.mxu0
        %v812 = vadd.f32 %v755, %v811
        %v813 = vpop.f32.mrf.mxu0
        %814 = vdwg.mxu0
        %v815 = vld [vmem:[%s2 + $0x50] sm:$0xf]
        %v816 = vld [vmem:[%s2 + $0x54] sm:$0xf]
        %v817 = vld [vmem:[%s2 + $0x58] sm:$0xf]
        %v818 = vld [vmem:[%s2 + $0x5c] sm:$0xf]
        %v819 = vld [vmem:[%s2 + $0x60] sm:$0xf]
        %v820 = vld [vmem:[%s2 + $0x64] sm:$0xf]
        %v821 = vpack.c.bf16 %v708, %v706
        %v822 = vpack.c.bf16 %v711, %v711
        %v829 = vunpack.c.l.b16 %v815
        %v830 = vunpack.c.l.b16 %v816
        %v831 = vunpack.c.l.b16 %v817
        %v832 = vunpack.c.l.b16 %v818
        %v833 = vunpack.c.l.b16 %v819
        %v834 = vunpack.c.l.b16 %v820
        %v835 = vpack.c.b16 %v830, %v829
        %v836 = vpack.c.b16 %v832, %v831
        %v837 = vpack.c.b16 %v834, %v833
        %v842 = vsel %vm292, %v821, 0
        %v845 = vsel %vm292, %v822, 0
        %847 = vmatpush.bf16.msra.mxu0 0
        %848 = vmatpush.bf16.msra.mxu0 0
        %849 = vmatpush.bf16.msra.mxu0 0
        %850 = vmatpush.bf16.msra.mxu0 0
        %851 = vmatpush.bf16.msra.mxu0 0
        %852 = vmatpush.bf16.msra.mxu0 %v837
        %853 = vmatpush.bf16.msra.mxu0 %v836
        %854 = vmatpush.bf16.msra.mxu0 %v835
        %855 = vmatmul.bf16.gmra.mxu0 %v842
        %v856 = vpop.f32.mrf.mxu0
        %v857 = vadd.f32 0.0, %v856
        %v858 = vpop.f32.mrf.mxu0
        %v859 = vadd.f32 0.0, %v858
        %860 = vmatmul.bf16.gmra.mxu0 %v845
        %v861 = vpop.f32.mrf.mxu0
        %v862 = vadd.f32 0.0, %v861
        %v863 = vpop.f32.mrf.mxu0
        %864 = vdwg.mxu0
        %v865 = vld [vmem:[%s2 + $0x68] sm:$0xf]
        %v866 = vld [vmem:[%s2 + $0x6c] sm:$0xf]
        %v867 = vld [vmem:[%s2 + $0x70] sm:$0xf]
        %v868 = vld [vmem:[%s2 + $0x74] sm:$0xf]
        %v869 = vpack.c.bf16 %v812, %v812
        %v870 = vld [vmem:[%s2 + $0x78] sm:$0x1]
        %v871 = vunpack.c.l.bf16 %v870
        %v872 = vperm.slane %v871, 0
        %v877 = vunpack.c.l.b16 %v865
        %v878 = vunpack.c.l.b16 %v866
        %v879 = vunpack.c.l.b16 %v867
        %v880 = vunpack.c.l.b16 %v868
        %v881 = vpack.c.b16 %v878, %v877
        %v882 = vpack.c.b16 %v880, %v879
        %v886 = vsel %vm363, %v869, 0
        %888 = vmatpush.bf16.msra.mxu0 0
        %889 = vmatpush.bf16.msra.mxu0 0
        %890 = vmatpush.bf16.msra.mxu0 0
        %891 = vmatpush.bf16.msra.mxu0 0
        %892 = vmatpush.bf16.msra.mxu0 0
        %893 = vmatpush.bf16.msra.mxu0 0
        %894 = vmatpush.bf16.msra.mxu0 %v882
        %895 = vmatpush.bf16.msra.mxu0 %v881
        %896 = vmatmul.bf16.gmra.mxu0 %v886
        %v897 = vpop.f32.mrf.mxu0
        %v898 = vadd.f32 %v872, %v897
        %v899 = vpop.f32.mrf.mxu0
        %900 = vdwg.mxu0
        %v901 = vxor.u32 %v898, 2147483648
        %v902 = vmul.f32 %v901, 1.442695
        %v903 = vpow.pop %v902
        %v904 = vadd.f32 %v903, 1.0
        %v905 = vrcp.pop %v904
        %v906 = vmul.f32 %v904, %v905
        %v907 = vsub.f32 1.0, %v906
        %v908 = vmul.f32 %v905, %v907
        %v909 = vadd.f32 %v905, %v908
        %vm910 = vweird.f32 %v904
        %vm911 = vweird.f32 %v905
        %vm912 = vmor %vm910, %vm911
        %v913 = vsel %vm912, %v905, %v909
        %v914 = vand.u32 2147483647, %v904
        %vm915 = vcmp.eq.f32.partialorder %v914, 8.507059e+37
        %v916 = vand.u32 %v904, 2147483648
        %v917 = vor.u32 1.1754944e-38, %v916
        %v918 = vsel %vm915, %v917, %v913
        %v919 = vmul.f32 1.0, %v918
        %v920 = vmul.f32 %v919, %v857
        %v921 = vmul.f32 %v919, %v859
        %v922 = vmul.f32 %v919, %v862
        %v923 = vxor.u32 %v812, 2147483648
        %v924 = vmul.f32 %v923, 1.442695
        %v925 = vpow.pop %v924
        %v926 = vadd.f32 %v925, 1.0
        %v927 = vrcp.pop %v926
        %v928 = vmul.f32 %v926, %v927
        %v929 = vsub.f32 1.0, %v928
        %v930 = vmul.f32 %v927, %v929
        %v931 = vadd.f32 %v927, %v930
        %vm932 = vweird.f32 %v926
        %vm933 = vweird.f32 %v927
        %vm934 = vmor %vm932, %vm933
        %v935 = vsel %vm934, %v927, %v931
        %v936 = vand.u32 2147483647, %v926
        %vm937 = vcmp.eq.f32.partialorder %v936, 8.507059e+37
        %v938 = vand.u32 %v926, 2147483648
        %v939 = vor.u32 1.1754944e-38, %v938
        %v940 = vsel %vm937, %v939, %v935
        %v941 = vmul.f32 1.0, %v940
        %v942 = vmul.f32 %v920, %v920
        %v943 = vmul.f32 %v921, %v921
        %v944 = vadd.f32 %v942, %v943
        %v945 = vmul.f32 %v922, %v922
        %v946 = vadd.f32 %v944, %v945
        %v947 = vrsqrt.pop %v946
        %v948 = vmul.f32 %v947, %v946
        %v949 = vmul.f32 %v948, %v947
        %v950 = vmul.f32 0.5, %v949
        %v951 = vsub.f32 1.5, %v950
        %v952 = vmul.f32 %v947, %v951
        %v953 = vmul.f32 %v946, %v952
        %vm954 = vcmp.eq.f32.partialorder %v946, inf
        %v955 = vsel %vm954, %v946, %v953
        %vm956 = vcmp.eq.f32.partialorder %v946, 0.0
        %v957 = vand.u32 %v946, 2147483648
        %v958 = vsel %vm956, %v957, %v955
        %v959 = vxor.u32 %v958, 2147483648
        %v960 = vmul.f32 %v959, 1.442695
        %v961 = vpow.pop %v960
        %v962 = vadd.f32 %v961, 1.0
        %v963 = vrcp.pop %v962
        %v964 = vmul.f32 %v962, %v963
        %v965 = vsub.f32 1.0, %v964
        %v966 = vmul.f32 %v963, %v965
        %v967 = vadd.f32 %v963, %v966
        %vm968 = vweird.f32 %v962
        %vm969 = vweird.f32 %v963
        %vm970 = vmor %vm968, %vm969
        %v971 = vsel %vm970, %v963, %v967
        %v972 = vand.u32 2147483647, %v962
        %vm973 = vcmp.eq.f32.partialorder %v972, 8.507059e+37
        %v974 = vand.u32 %v962, 2147483648
        %v975 = vor.u32 1.1754944e-38, %v974
        %v976 = vsel %vm973, %v975, %v971
        %v977 = vmul.f32 1.0, %v976
        %v978 = vmul.f32 %v571, %v941
        %v979 = vsub.f32 1.0, %v941
        %v980 = vmul.f32 %v194, %v979
        %v981 = vadd.f32 %v978, %v980
        %v982 = vmul.f32 %v663, %v977
        %v983 = vsub.f32 1.0, %v977
        %985 = vrot.lane.b32.xlu0 %v983, 32
        %v986 = vpop.permute.xlu0 %985
        %v988 = vmul.f32 %v194, %v986
        %990 = vrot.lane.b32.xlu0 %v988, 96
        %v991 = vpop.permute.xlu0 %990
        %v993 = vadd.f32 %v982, %v991
        %v994 = vmul.f32 %v664, %v977
        %995 = vrot.lane.b32.xlu0 %v983, 48
        %v996 = vpop.permute.xlu0 %995
        %v998 = vmul.f32 %v194, %v996
        %1000 = vrot.lane.b32.xlu0 %v998, 80
        %v1001 = vpop.permute.xlu0 %1000
        %v1003 = vadd.f32 %v994, %v1001
        %v1004 = vmul.f32 %v665, %v977
        %1005 = vrot.lane.b32.xlu0 %v983, 64
        %v1006 = vpop.permute.xlu0 %1005
        %v1008 = vmul.f32 %v194, %v1006
        %1010 = vrot.lane.b32.xlu0 %v1008, 64
        %v1011 = vpop.permute.xlu0 %1010
        %v1013 = vadd.f32 %v1004, %v1011
        %v1014 = vsel %vm363, %v981, 0.0
        %1015 = vadd.xlane.f32.xlu0 %v1014
        %v1016 = vpop.xlane.xlu0 %1015
        %v1017 = vrcp.pop 32.0
        %v1018 = vmul.f32 32.0, %v1017
        %v1019 = vsub.f32 1.0, %v1018
        %v1020 = vmul.f32 %v1017, %v1019
        %v1021 = vadd.f32 %v1017, %v1020
        %vm1022 = vweird.f32 %v1017
        %v1023 = vsel %vm1022, %v1017, %v1021
        %v1024 = vmul.f32 %v1016, %v1023
        %v1025 = vsub.f32 %v981, %v1024
        %v1026 = vmul.f32 %v1025, %v1025
        %v1027 = vsel %vm363, %v1026, 0.0
        %1028 = vadd.xlane.f32.xlu0 %v1027
        %v1029 = vpop.xlane.xlu0 %1028
        %v1030 = vmul.f32 %v1029, %v1023
        %v1031 = vadd.f32 %v1030, 1e-05
        %v1032 = vrsqrt.pop %v1031
        %v1033 = vmul.f32 %v1032, %v1031
        %v1034 = vmul.f32 %v1033, %v1032
        %v1035 = vmul.f32 0.5, %v1034
        %v1036 = vsub.f32 1.5, %v1035
        %v1037 = vmul.f32 %v1032, %v1036
        %vm1038 = vweird.f32 %v1031
        %vm1039 = vweird.f32 %v1032
        %vm1040 = vmor %vm1038, %vm1039
        %v1041 = vsel %vm1040, %v1032, %v1037
        %v1042 = vmul.f32 %v1025, %v1041
        %v1043 = vld [vmem:[%s1 + $0x74] sm:$0x1]
        %v1044 = vunpack.c.l.bf16 %v1043
        %v1045 = vperm.slane %v1044, 0
        %v1046 = vmul.f32 %v1042, %v1045
        %v1047 = vld [vmem:[%s1 + $0x78] sm:$0x1]
        %v1048 = vunpack.c.l.bf16 %v1047
        %v1049 = vperm.slane %v1048, 0
        %v1050 = vadd.f32 %v1046, %v1049
        %v1051 = vmul.f32 %v993, %v993
        %v1052 = vmul.f32 %v1003, %v1003
        %v1053 = vadd.f32 %v1051, %v1052
        %v1054 = vmul.f32 %v1013, %v1013
        %v1055 = vadd.f32 %v1053, %v1054
        %v1056 = vsel %vm218, %v1055, 0.0
        %1057 = vadd.xlane.f32.xlu0 %v1056
        %v1058 = vpop.xlane.xlu0 %1057
        %v1059 = vadd.f32 %v1058, 1e-08
        %v1060 = vrcp.pop 16.0
        %v1061 = vmul.f32 16.0, %v1060
        %v1062 = vsub.f32 1.0, %v1061
        %v1063 = vmul.f32 %v1060, %v1062
        %v1064 = vadd.f32 %v1060, %v1063
        %vm1065 = vweird.f32 %v1060
        %v1066 = vsel %vm1065, %v1060, %v1064
        %v1067 = vmul.f32 %v1059, %v1066
        %v1068 = vrsqrt.pop %v1067
        %v1069 = vmul.f32 %v1068, %v1067
        %v1070 = vmul.f32 %v1069, %v1068
        %v1071 = vmul.f32 0.5, %v1070
        %v1072 = vsub.f32 1.5, %v1071
        %v1073 = vmul.f32 %v1068, %v1072
        %vm1074 = vweird.f32 %v1067
        %vm1075 = vweird.f32 %v1068
        %vm1076 = vmor %vm1074, %vm1075
        %v1077 = vsel %vm1076, %v1068, %v1073
        %v1078 = vmul.f32 %v993, %v1077
        %v1079 = vmul.f32 %v1003, %v1077
        %v1080 = vmul.f32 %v1013, %v1077
        %1082 = vrot.lane.b32.xlu0 %v1078, 32
        %v1083 = vpop.permute.xlu0 %1082
        %1086 = vrot.lane.b32.xlu0 %v1079, 48
        %v1087 = vpop.permute.xlu0 %1086
        %1090 = vrot.lane.b32.xlu0 %v1080, 64
        %v1091 = vpop.permute.xlu0 %1090
        %v1093 = vsel %vm363, %v1050, %v1083
        %v1094 = vsel %vm292, %v1093, %v1087
        %vm1095 = vcmask 523264
        %v1096 = vsel %vm1095, %v1094, %v1091
        %v1097 = vsel %vm736, %v1096, 0.0
        %1098 = vst [vmem:[%s188] sm:$0xff] %v1097
        %s1099 = sand.u32 %s115, 1
        %s1100 = scalar_lea.sflag [#allocation3], %s1099
        %s1101 = sand.u32 %s115, 1
        %s1102 = smul.addr %s1101, 8
        %s1103 = scalar_lea.vmem [#allocation2], %s1102
        // Predicated region
        $region37: #{tpu_custom_call.1} parent=35 // pred_check
          %p1104 = pneg %p125
        $region38: #{tpu_custom_call.1} parent=35 // pred_check_branch
          %1106 = sbr.rel (%p1104) target = $region40
        $region39: #{tpu_custom_call.1} parent=35 // pred_region
          %1108 = vsyncadd %s1100, 0
          %s1109 = smul.addr %s18, 8
          %s1110 = scalar_lea.hbm %s4, %s1109
          %s1112 = sshll.u32 %s1103, 4
          %s1113 = int_to_ptr.vmem [resolvable:$true] %s1112
          %s1114 = sshll.u32 %s1110, 4
          %s1115 = int_to_ptr.hbm [resolvable:$true] %s1114
          %1117 = dma.vmem_to_hbm [thread:$0]  %s1113, 128, %s1115, %s1100
        $region40: #{tpu_custom_call.1} parent=35 // pred_fallthru
          _
      $region36: #{tpu_custom_call.1} parent=5 // pred_fallthru
        _
      %p1118 = scmp.le.s32.totalorder 2, %s13
      // Predicated region
      $region41: #{tpu_custom_call.1} parent=5 // pred_check
        %p1119 = pneg %p1118
      $region42: #{tpu_custom_call.1} parent=5 // pred_check_branch
        %1121 = sbr.rel (%p1119) target = $region44
      $region43: #{tpu_custom_call.1} parent=5 // pred_region
        %s1122 = ssub.s32 %s13, 2
        // Predicated region
        $region45: #{tpu_custom_call.1} parent=43 // pred_check
          %p1123 = pneg %p131
        $region46: #{tpu_custom_call.1} parent=43 // pred_check_branch
          %1125 = sbr.rel (%p1123) target = $region48
        $region47: #{tpu_custom_call.1} parent=43 // pred_region
          %s1126 = sand.u32 %s116, 1
          %s1127 = scalar_lea.sflag [#allocation3], %s1126
          %s1128 = sand.u32 %s116, 1
          %s1129 = smul.addr %s1128, 8
          %s1130 = scalar_lea.vmem [#allocation2], %s1129
          %1132 = dma.done %s1127, 128
        $region48: #{tpu_custom_call.1} parent=43 // pred_fallthru
          _
      $region44: #{tpu_custom_call.1} parent=5 // pred_fallthru
        _
    $region6: #{tpu_custom_call.1} parent=1 // loop_footer
      %s17 = sadd.s32 1, %s13
    $region7: #{tpu_custom_call.1} parent=1 // loop_footer_branch
      %12 = sbr.rel target = $region3
    $region8: #{tpu_custom_call.1} parent=1 // loop_exit
      _
    %1133 = vsyncpa [#allocation3], 1
    %s1134 = scalar_lea.sflag [#allocation3], 1
    %1135 = vsyncpa %s1134, 1

</llo_original>
